<compile_context>
chip_gen: v7x
topology: tpu7x:2x2x1
jax: 0.10.0
libtpu: 0.0.40
codegen_flags: <defaults>
</compile_context>

<pallas_src>
import jax
import jax.numpy as jnp
from jax.experimental import pallas as pl
from jax.experimental.pallas import tpu as pltpu


def _round_up(n, m):
    return ((n + m - 1) // m) * m


def dynamic_mlp_kernel(x_ref,
                       w0_ref, b0_ref,
                       w1_ref, b1_ref,
                       w2_ref, b2_ref,
                       ones_ref,
                       out_ref):
    """One batch tile of the fused, lane-packed MLP forward.

    x_ref:    (tbp, pack*in_dim)  bf16 — `pack` original rows per packed row.
    w*_ref:   block-diagonal bf16 weights; b*_ref: (1, pack*fan_out) f32.
    ones_ref: (pack*out_dim, pack*out_dim) f32 block-diag ones (segment sums).
    out_ref:  (tbp, 3*pack*out_dim) f32 — [probs | abs_logits | logits] packed.
    """
    xp = x_ref[...]                                        # bf16, lane-dense

    # layer_0: Linear + ReLU   (bf16 MXU inputs, f32 accumulate, f32 elementwise)
    h0 = jnp.dot(xp, w0_ref[...], preferred_element_type=jnp.float32) + b0_ref[...]
    h0 = jnp.maximum(h0, 0.0)

    # layer_2: Linear + Tanh
    h1 = jnp.dot(h0.astype(jnp.bfloat16), w1_ref[...],
                 preferred_element_type=jnp.float32) + b1_ref[...]
    h1 = jnp.tanh(h1)

    # last_layer: Linear  -> packed logits, each out_dim-lane segment = one row
    logits = jnp.dot(h1.astype(jnp.bfloat16), w2_ref[...],
                     preferred_element_type=jnp.float32) + b2_ref[...]
    w = logits.shape[1]                                    # pack * out_dim

    # Segmented softmax, numerically stable, exact normalization.
    # NOTE: the shift uses the packed-row global max; softmax is shift-invariant
    # so this is exact as long as per-segment spread stays < ~80 (guaranteed:
    # the penultimate layer is tanh-bounded, so |logits| is small).
    m = jnp.max(logits, axis=1, keepdims=True)
    e = jnp.exp(logits - m)
    denom = jnp.dot(e, ones_ref[...],                      # per-lane segment sum
                    preferred_element_type=jnp.float32)
    probs = e / denom                                      # exact divide (sums to 1)

    # Fused epilogue: three direct lane sub-slice stores (no lane-axis concat).
    out_ref[:, 0:w]       = probs.astype(out_ref.dtype)
    out_ref[:, w:2 * w]   = jnp.abs(logits).astype(out_ref.dtype)
    out_ref[:, 2 * w:3 * w] = logits.astype(out_ref.dtype)


def dynamic_mlp_forward(x, params, *, tile_rows=8192):
    """x: [B, in_dim] float32. params: dict of weights/biases (see init_params)."""
    B, in_dim = x.shape
    out_dim = params["w2"].shape[1]

    # Lane-packing factor: pack several batch rows side-by-side on the lane axis
    # via block-diagonal weights so matmuls / relu / tanh run lane-dense.
    pack = 128 // in_dim if (in_dim <= 64 and 128 % in_dim == 0) else 1

    eye = jnp.eye(pack, dtype=jnp.float32)

    def bd(w):        # (fi, fo) f32 -> (pack*fi, pack*fo) bf16 block-diagonal
        return jnp.kron(eye, w).astype(jnp.bfloat16)

    def bd_bias(b):   # (1, fo) f32 -> (1, pack*fo) f32
        return jnp.tile(b, (1, pack))

    w0, b0 = bd(params["w0"]), bd_bias(params["b0"])
    w1, b1 = bd(params["w1"]), bd_bias(params["b1"])
    w2, b2 = bd(params["w2"]), bd_bias(params["b2"])
    # Block-diag ones: one tiny matmul gives every lane its segment's sum.
    ones_bd = jnp.kron(eye, jnp.ones((out_dim, out_dim), jnp.float32))

    # ---- batch tiling on packed rows ----
    bp_rows = pl.cdiv(B, pack)                              # packed rows needed
    tbp_cap = max(16, (tile_rows // pack) // 16 * 16)       # keep multiples of 16 (bf16 sublanes)
    tbp_full = _round_up(bp_rows, 16)
    tbp = min(tbp_cap, tbp_full)
    if tbp >= tbp_full and tbp_full >= 32:
        # Whole batch would fit in one tile: split so grid >= 2 (v7x megacore).
        tbp = _round_up(tbp_full // 2, 16)
    bp_pad = _round_up(bp_rows, tbp)
    grid = (bp_pad // tbp,)

    # Pad, pack (free row-major reshape), cast to bf16 ONCE in the wrapper.
    b_pad = bp_pad * pack
    if b_pad != B:
        x = jnp.pad(x, ((0, b_pad - B), (0, 0)))
    x_packed = x.reshape(bp_pad, pack * in_dim).astype(jnp.bfloat16)

    fused_w = 3 * pack * out_dim

    def resident(arr):   # full-shape block, VMEM-resident for every grid step
        return pl.BlockSpec(arr.shape, lambda i: (0,) * arr.ndim)

    fused = pl.pallas_call(
        dynamic_mlp_kernel,
        out_shape=jax.ShapeDtypeStruct((bp_pad, fused_w), jnp.float32),
        grid=grid,
        in_specs=[
            pl.BlockSpec((tbp, pack * in_dim), lambda i: (i, 0)),   # streamed bf16 x tile
            resident(w0), resident(b0),
            resident(w1), resident(b1),
            resident(w2), resident(b2),
            resident(ones_bd),
        ],
        out_specs=pl.BlockSpec((tbp, fused_w), lambda i: (i, 0)),
        compiler_params=pltpu.CompilerParams(
            dimension_semantics=("parallel",)),                     # megacore on v7x
    )(x_packed, w0, b0, w1, b1, w2, b2, ones_bd)

    # Unpack with free XLA reshapes (row-major contiguous).
    w = pack * out_dim

    def unpack(sl):
        return sl.reshape(b_pad, out_dim)[:B]

    return {
        "probs": unpack(fused[:, 0:w]),
        "abs_logits": unpack(fused[:, w:2 * w]),
        "logits": unpack(fused[:, 2 * w:3 * w]),
    }


def init_params(key, in_dim, out_dim):
    """Deterministic synthetic init mimicking nn.Linear's U(-1/sqrt(fan_in), 1/sqrt(fan_in))."""
    d_h0 = in_dim * 2   # dim_factor=2
    d_h1 = in_dim * 1   # dim_factor=1

    def linear_init(k, fan_in, fan_out):
        kw, kb = jax.random.split(k)
        bound = 1.0 / jnp.sqrt(jnp.float32(fan_in))
        w = jax.random.uniform(kw, (fan_in, fan_out), jnp.float32, -bound, bound)
        b = jax.random.uniform(kb, (1, fan_out), jnp.float32, -bound, bound)
        return w, b

    k0, k1, k2 = jax.random.split(key, 3)
    w0, b0 = linear_init(k0, in_dim, d_h0)
    w1, b1 = linear_init(k1, d_h0, d_h1)
    w2, b2 = linear_init(k2, d_h1, out_dim)
    return {"w0": w0, "b0": b0, "w1": w1, "b1": b1, "w2": w2, "b2": b2}


def _reference_forward_bf16_path(x, params):
    """Pure-JAX reference following the same bf16-MXU / f32-accumulate path."""
    bf16, f32 = jnp.bfloat16, jnp.float32
    w0 = params["w0"].astype(bf16)
    w1 = params["w1"].astype(bf16)
    w2 = params["w2"].astype(bf16)
    h0 = jnp.maximum(
        jnp.dot(x.astype(bf16), w0, preferred_element_type=f32) + params["b0"], 0.0)
    h1 = jnp.tanh(
        jnp.dot(h0.astype(bf16), w1, preferred_element_type=f32) + params["b1"])
    logits = jnp.dot(h1.astype(bf16), w2, preferred_element_type=f32) + params["b2"]
    return {"probs": jax.nn.softmax(logits, axis=1),
            "abs_logits": jnp.abs(logits),
            "logits": logits}


def _reference_forward_f32(x, params):
    h0 = jnp.maximum(x @ params["w0"] + params["b0"], 0.0)
    h1 = jnp.tanh(h0 @ params["w1"] + params["b1"])
    logits = h1 @ params["w2"] + params["b2"]
    return {"probs": jax.nn.softmax(logits, axis=1),
            "abs_logits": jnp.abs(logits),
            "logits": logits}


if __name__ == "__main__":
    in_dim, out_dim = 32, 8
    batch = 1000   # not a tile multiple -> exercises padding + multi-step grid

    key = jax.random.PRNGKey(0)
    kx, kp = jax.random.split(key)
    x = jax.random.normal(kx, (batch, in_dim), jnp.float32)
    params = init_params(kp, in_dim, out_dim)

    out = dynamic_mlp_forward(x, params)
    jax.block_until_ready(out)

    assert out["logits"].shape == (batch, out_dim)
    assert out["probs"].shape == (batch, out_dim)
    assert out["abs_logits"].shape == (batch, out_dim)

    # Tight check against a reference following the same bf16-input /
    # f32-accumulate numeric path.
    ref = _reference_forward_bf16_path(x, params)
    assert bool(jnp.allclose(out["logits"], ref["logits"], atol=1e-3)), "logits mismatch"
    assert bool(jnp.allclose(out["abs_logits"], ref["abs_logits"], atol=1e-3)), "abs mismatch"
    assert bool(jnp.allclose(out["probs"], ref["probs"], atol=2e-3)), "probs mismatch"

    # Loose sanity check against the full-f32 reference (bf16 MXU inputs only).
    ref32 = _reference_forward_f32(x, params)
    assert bool(jnp.allclose(out["logits"], ref32["logits"], atol=1e-1)), "f32 sanity mismatch"

    # Exact-divide softmax -> rows sum to 1 up to fp32 rounding.
    assert bool(jnp.allclose(jnp.sum(out["probs"], axis=1),
                             jnp.ones((batch,), jnp.float32),
                             atol=2e-3)), "probs not normalized"

    print("KERNEL_OK")
</pallas_src>

<mosaic_0001>
module attributes {stable_mosaic.version = 11 : i64} {
  func.func @dynamic_mlp_kernel(%arg0: i32, %arg1: memref<128x128xbf16, #tpu.memory_space<vmem>>, %arg2: memref<128x256xbf16, #tpu.memory_space<vmem>>, %arg3: memref<1x256xf32, #tpu.memory_space<vmem>>, %arg4: memref<256x128xbf16, #tpu.memory_space<vmem>>, %arg5: memref<1x128xf32, #tpu.memory_space<vmem>>, %arg6: memref<128x32xbf16, #tpu.memory_space<vmem>>, %arg7: memref<1x32xf32, #tpu.memory_space<vmem>>, %arg8: memref<32x32xf32, #tpu.memory_space<vmem>>, %arg9: memref<128x96xf32, #tpu.memory_space<vmem>>) attributes {dimension_semantics = [#tpu.dimension_semantics<parallel>], iteration_bounds = array<i64: 2>, scalar_prefetch = 0 : i64, scratch_operands = 0 : i64, tpu.core_type = #tpu.core_type<tc>, window_params = [{transform_indices = @transform_0, window_bounds = array<i64: 128, 128>}, {pipeline_mode = #tpu.pipeline_mode<synchronous>, transform_indices = @transform_1, window_bounds = array<i64: 128, 256>}, {pipeline_mode = #tpu.pipeline_mode<synchronous>, transform_indices = @transform_2, window_bounds = array<i64: 1, 256>}, {pipeline_mode = #tpu.pipeline_mode<synchronous>, transform_indices = @transform_3, window_bounds = array<i64: 256, 128>}, {pipeline_mode = #tpu.pipeline_mode<synchronous>, transform_indices = @transform_4, window_bounds = array<i64: 1, 128>}, {pipeline_mode = #tpu.pipeline_mode<synchronous>, transform_indices = @transform_5, window_bounds = array<i64: 128, 32>}, {pipeline_mode = #tpu.pipeline_mode<synchronous>, transform_indices = @transform_6, window_bounds = array<i64: 1, 32>}, {pipeline_mode = #tpu.pipeline_mode<synchronous>, transform_indices = @transform_7, window_bounds = array<i64: 32, 32>}, {transform_indices = @transform_8, window_bounds = array<i64: 128, 96>}]} {
    %c0 = arith.constant 0 : index
    %c0_0 = arith.constant 0 : index
    %0 = vector.load %arg1[%c0, %c0_0] : memref<128x128xbf16, #tpu.memory_space<vmem>>, vector<128x128xbf16>
    %c0_1 = arith.constant 0 : index
    %c0_2 = arith.constant 0 : index
    %1 = vector.load %arg2[%c0_1, %c0_2] : memref<128x256xbf16, #tpu.memory_space<vmem>>, vector<128x256xbf16>
    %cst = arith.constant dense<0.000000e+00> : vector<128x256xf32>
    %2 = tpu.matmul %0, %1, %cst {dimension_numbers = #tpu.dot_dimension_numbers<[1], [0], [0], [1], [0, 0, 1, 1], [], []>} : vector<128x128xbf16>, vector<128x256xbf16>, vector<128x256xf32> -> vector<128x256xf32>
    %c0_3 = arith.constant 0 : index
    %c0_4 = arith.constant 0 : index
    %3 = vector.load %arg3[%c0_3, %c0_4] : memref<1x256xf32, #tpu.memory_space<vmem>>, vector<1x256xf32>
    %4 = vector.broadcast %3 : vector<1x256xf32> to vector<128x256xf32>
    %5 = arith.addf %2, %4 : vector<128x256xf32>
    %cst_5 = arith.constant 0.000000e+00 : f32
    %6 = vector.broadcast %cst_5 : f32 to vector<128x256xf32>
    %7 = arith.maximumf %5, %6 : vector<128x256xf32>
    %8 = arith.truncf %7 : vector<128x256xf32> to vector<128x256xbf16>
    %c0_6 = arith.constant 0 : index
    %c0_7 = arith.constant 0 : index
    %9 = vector.load %arg4[%c0_6, %c0_7] : memref<256x128xbf16, #tpu.memory_space<vmem>>, vector<256x128xbf16>
    %cst_8 = arith.constant dense<0.000000e+00> : vector<128x128xf32>
    %10 = tpu.matmul %8, %9, %cst_8 {dimension_numbers = #tpu.dot_dimension_numbers<[1], [0], [0], [1], [0, 0, 1, 1], [], []>} : vector<128x256xbf16>, vector<256x128xbf16>, vector<128x128xf32> -> vector<128x128xf32>
    %c0_9 = arith.constant 0 : index
    %c0_10 = arith.constant 0 : index
    %11 = vector.load %arg5[%c0_9, %c0_10] : memref<1x128xf32, #tpu.memory_space<vmem>>, vector<1x128xf32>
    %12 = vector.broadcast %11 : vector<1x128xf32> to vector<128x128xf32>
    %13 = arith.addf %10, %12 : vector<128x128xf32>
    %14 = math.tanh %13 : vector<128x128xf32>
    %15 = arith.truncf %14 : vector<128x128xf32> to vector<128x128xbf16>
    %c0_11 = arith.constant 0 : index
    %c0_12 = arith.constant 0 : index
    %16 = vector.load %arg6[%c0_11, %c0_12] : memref<128x32xbf16, #tpu.memory_space<vmem>>, vector<128x32xbf16>
    %cst_13 = arith.constant dense<0.000000e+00> : vector<128x32xf32>
    %17 = tpu.matmul %15, %16, %cst_13 {dimension_numbers = #tpu.dot_dimension_numbers<[1], [0], [0], [1], [0, 0, 1, 1], [], []>} : vector<128x128xbf16>, vector<128x32xbf16>, vector<128x32xf32> -> vector<128x32xf32>
    %c0_14 = arith.constant 0 : index
    %c0_15 = arith.constant 0 : index
    %18 = vector.load %arg7[%c0_14, %c0_15] : memref<1x32xf32, #tpu.memory_space<vmem>>, vector<1x32xf32>
    %19 = vector.broadcast %18 : vector<1x32xf32> to vector<128x32xf32>
    %20 = arith.addf %17, %19 : vector<128x32xf32>
    %cst_16 = arith.constant dense<0xFF800000> : vector<128xf32>
    %21 = vector.multi_reduction <maximumf>, %20, %cst_16 [1] : vector<128x32xf32> to vector<128xf32>
    %22 = vector.shape_cast %21 : vector<128xf32> to vector<128x1xf32>
    %23 = vector.broadcast %22 : vector<128x1xf32> to vector<128x32xf32>
    %24 = arith.subf %20, %23 : vector<128x32xf32>
    %25 = math.exp %24 : vector<128x32xf32>
    %c0_17 = arith.constant 0 : index
    %c0_18 = arith.constant 0 : index
    %26 = vector.load %arg8[%c0_17, %c0_18] : memref<32x32xf32, #tpu.memory_space<vmem>>, vector<32x32xf32>
    %cst_19 = arith.constant dense<0.000000e+00> : vector<128x32xf32>
    %27 = tpu.matmul %25, %26, %cst_19 {dimension_numbers = #tpu.dot_dimension_numbers<[1], [0], [0], [1], [0, 0, 1, 1], [], []>} : vector<128x32xf32>, vector<32x32xf32>, vector<128x32xf32> -> vector<128x32xf32>
    %28 = arith.divf %25, %27 : vector<128x32xf32>
    %c0_20 = arith.constant 0 : index
    %c0_21 = arith.constant 0 : index
    %29 = vector.load %arg9[%c0_20, %c0_21] : memref<128x96xf32, #tpu.memory_space<vmem>>, vector<128x32xf32>
    tpu.vector_store %arg9[%c0_20, %c0_21], %28 {strides = array<i32>} : memref<128x96xf32, #tpu.memory_space<vmem>>, vector<128x32xf32>,
    %30 = math.absf %20 : vector<128x32xf32>
    %c0_22 = arith.constant 0 : index
    %c32 = arith.constant 32 : index
    %31 = vector.load %arg9[%c0_22, %c32] : memref<128x96xf32, #tpu.memory_space<vmem>>, vector<128x32xf32>
    tpu.vector_store %arg9[%c0_22, %c32], %30 {strides = array<i32>} : memref<128x96xf32, #tpu.memory_space<vmem>>, vector<128x32xf32>,
    %c0_23 = arith.constant 0 : index
    %c64 = arith.constant 64 : index
    %32 = vector.load %arg9[%c0_23, %c64] : memref<128x96xf32, #tpu.memory_space<vmem>>, vector<128x32xf32>
    tpu.vector_store %arg9[%c0_23, %c64], %20 {strides = array<i32>} : memref<128x96xf32, #tpu.memory_space<vmem>>, vector<128x32xf32>,
    return
  }
  func.func @transform_0(%arg0: i32) -> (i32, i32) {
    %c0_i32 = arith.constant 0 : i32
    %c0_i32_0 = arith.constant 0 : i32
    return %arg0, %c0_i32 : i32, i32
  }
  func.func @transform_1(%arg0: i32) -> (i32, i32) {
    %c0_i32 = arith.constant 0 : i32
    %c0_i32_0 = arith.constant 0 : i32
    %c0_i32_1 = arith.constant 0 : i32
    return %c0_i32, %c0_i32_0 : i32, i32
  }
  func.func @transform_2(%arg0: i32) -> (i32, i32) {
    %c0_i32 = arith.constant 0 : i32
    %c0_i32_0 = arith.constant 0 : i32
    %c0_i32_1 = arith.constant 0 : i32
    return %c0_i32, %c0_i32_0 : i32, i32
  }
  func.func @transform_3(%arg0: i32) -> (i32, i32) {
    %c0_i32 = arith.constant 0 : i32
    %c0_i32_0 = arith.constant 0 : i32
    %c0_i32_1 = arith.constant 0 : i32
    return %c0_i32, %c0_i32_0 : i32, i32
  }
  func.func @transform_4(%arg0: i32) -> (i32, i32) {
    %c0_i32 = arith.constant 0 : i32
    %c0_i32_0 = arith.constant 0 : i32
    %c0_i32_1 = arith.constant 0 : i32
    return %c0_i32, %c0_i32_0 : i32, i32
  }
  func.func @transform_5(%arg0: i32) -> (i32, i32) {
    %c0_i32 = arith.constant 0 : i32
    %c0_i32_0 = arith.constant 0 : i32
    %c0_i32_1 = arith.constant 0 : i32
    return %c0_i32, %c0_i32_0 : i32, i32
  }
  func.func @transform_6(%arg0: i32) -> (i32, i32) {
    %c0_i32 = arith.constant 0 : i32
    %c0_i32_0 = arith.constant 0 : i32
    %c0_i32_1 = arith.constant 0 : i32
    return %c0_i32, %c0_i32_0 : i32, i32
  }
  func.func @transform_7(%arg0: i32) -> (i32, i32) {
    %c0_i32 = arith.constant 0 : i32
    %c0_i32_0 = arith.constant 0 : i32
    %c0_i32_1 = arith.constant 0 : i32
    return %c0_i32, %c0_i32_0 : i32, i32
  }
  func.func @transform_8(%arg0: i32) -> (i32, i32) {
    %c0_i32 = arith.constant 0 : i32
    %c0_i32_0 = arith.constant 0 : i32
    return %arg0, %c0_i32 : i32, i32
  }
}

</mosaic_0001>

<llo_original>
// kernel: tpu_custom_call.1
$region0: #{tpu_custom_call.1}
  #allocation0 [shape = 'u32[]', space=smem, size = 0x4, offset = 0x4, fixed_abs, tag = 'smem constant byte address 0x4 - core index']
  #allocation1 [shape = 'u32[144,128]{1,0:T(1,128)}', space=vmem, size = 0x12000, scoped, tag = 'internal scratch']
  %s0 = inlined_call_operand.hbm [shape: bf16[256,128], index: 0, kind: input, shape index: {}]
  %s1 = inlined_call_operand.hbm [shape: bf16[128,256], index: 1, kind: input, shape index: {}]
  %s2 = inlined_call_operand.vmem [shape: f32[1,256], index: 2, kind: input, shape index: {}]
  %s3 = inlined_call_operand.hbm [shape: bf16[256,128], index: 3, kind: input, shape index: {}]
  %s4 = inlined_call_operand.vmem [shape: f32[1,128], index: 4, kind: input, shape index: {}]
  %s5 = inlined_call_operand.vmem [shape: bf16[128,32], index: 5, kind: input, shape index: {}]
  %s6 = inlined_call_operand.vmem [shape: f32[1,32], index: 6, kind: input, shape index: {}]
  %s7 = inlined_call_operand.vmem [shape: f32[32,32], index: 7, kind: input, shape index: {}]
  %s8 = inlined_call_operand.vmem [shape: f32[256,96], index: 8, kind: output, shape index: {}]
  %s9 = sld [smem:[#allocation0]]
  $region77: #{tpu_custom_call.1} parent=0
    _
  %s11 = ssub.s32 1, %s9
  %s12 = scalar_select 0, %s11, %s9
  $region1: #{tpu_custom_call.1} parent=0
    #allocation2 [shape = 'u8[65536]{0}', space=vmem, size = 0x10000, scoped, tag = 'input window, operand 0']
    #allocation3 [shape = 's32[2]{0}', space=sflag, size = 0x8, scoped, tag = 'scoped memory for tpu_custom_call.1']
    #allocation4 [shape = 'u8[65536]{0}', space=vmem, size = 0x10000, scoped, tag = 'input window, operand 1, single buffered']
    #allocation5 [shape = 's32[1]{0}', space=sflag, size = 0x4, scoped, tag = 'scoped memory for tpu_custom_call.1']
    #allocation6 [shape = 'u8[65536]{0}', space=vmem, size = 0x10000, scoped, tag = 'input window, operand 3, single buffered']
    %13 = vsyncpa [#allocation3], 0
    %s14 = scalar_lea.sflag [#allocation3], 1
    %15 = vsyncpa %s14, 0
    %16 = vsyncpa [#allocation5], 0
    loop: start=0, step=1, limit=4
    $region2: #{tpu_custom_call.1} parent=1 // loop_pre_header
      _
    $region3: #{tpu_custom_call.1} parent=1 // loop_header
      %s18 = sphi 0, %s22
      %p19 = scmp.ge.s32.totalorder %s18, 4
      %s28 = sphi 0, %s30
      %s31 = sphi 0, %s28
      %s32 = sphi 0, %s31
      %s48 = sphi 0, %s32
      %s52 = sphi 0, %s52
      %s54 = sphi 0, %s52
      %s55 = sphi 0, %s54
      %s69 = sphi 0, %s55
      %s73 = sphi 0, %s73
      %s75 = sphi 0, %s73
      %s76 = sphi 0, %s75
      %s90 = sphi 0, %s76
      %s94 = sphi 0, %s94
      %s96 = sphi 0, %s94
      %s97 = sphi 0, %s96
      %s111 = sphi 0, %s97
      %s115 = sphi 0, %s115
      %s117 = sphi 0, %s115
      %s118 = sphi 0, %s117
      %s132 = sphi 0, %s118
      %s136 = sphi 0, %s136
      %s138 = sphi 0, %s136
      %s139 = sphi 0, %s138
      %s153 = sphi 0, %s139
      %s157 = sphi 0, %s157
      %s159 = sphi 0, %s157
      %s160 = sphi 0, %s159
      %s174 = sphi 0, %s160
      %s178 = sphi 0, %s178
      %s180 = sphi 0, %s178
      %s181 = sphi 0, %s180
      %s195 = sphi 0, %s181
      %s201 = sphi 0, %s203
      %s204 = sphi 0, %s201
      %s205 = sphi 0, %s204
      %s221 = sphi 0, %s205
    $region4: #{tpu_custom_call.1} parent=1 // loop_header_branch
      %21 = sbr.rel (%p19) target = $region8
    $region5: #{tpu_custom_call.1} parent=1 // loop_body
      %s23 = ssub.s32 %s18, 1
      %s24 = ssub.s32 %s18, 2
      %s25 = sadd.s32 %s18, 1
      %s26 = ssub.s32 %s18, %s25
      %p27 = scmp.eq.s32.totalorder %s26, 0
      %s29 = sadd.s32 %s28, 1
      %s30 = scalar_select %p27, %s28, %s29
      %p33 = pneg %p27
      %p34 = scmp.eq.s32.totalorder %s18, 1
      %p35 = por %p33, %p34
      %p36 = scmp.ne.s32.totalorder %s28, %s31
      %p37 = scmp.eq.s32.totalorder %s18, 0
      %p38 = por %p36, %p37
      %p39 = scmp.ne.s32.totalorder %s28, %s31
      %p40 = scmp.eq.s32.totalorder %s23, 1
      %p41 = por %p39, %p40
      %p42 = scmp.ne.s32.totalorder %s31, %s32
      %p43 = scmp.eq.s32.totalorder %s23, 0
      %p44 = por %p42, %p43
      %p45 = scmp.ne.s32.totalorder %s31, %s32
      %p46 = scmp.eq.s32.totalorder %s24, 1
      %p47 = por %p45, %p46
      %p49 = scmp.ne.s32.totalorder %s32, %s48
      %p50 = scmp.eq.s32.totalorder %s24, 0
      %p51 = por %p49, %p50
      %s53 = sadd.s32 %s52, 1
      %p56 = scmp.eq.s32.totalorder %s18, 1
      %p57 = scmp.ne.s32.totalorder %s52, %s54
      %p58 = scmp.eq.s32.totalorder %s18, 0
      %p59 = por %p57, %p58
      %p60 = scmp.ne.s32.totalorder %s52, %s54
      %p61 = scmp.eq.s32.totalorder %s23, 1
      %p62 = por %p60, %p61
      %p63 = scmp.ne.s32.totalorder %s54, %s55
      %p64 = scmp.eq.s32.totalorder %s23, 0
      %p65 = por %p63, %p64
      %p66 = scmp.ne.s32.totalorder %s54, %s55
      %p67 = scmp.eq.s32.totalorder %s24, 1
      %p68 = por %p66, %p67
      %p70 = scmp.ne.s32.totalorder %s55, %s69
      %p71 = scmp.eq.s32.totalorder %s24, 0
      %p72 = por %p70, %p71
      %s74 = sadd.s32 %s73, 1
      %p77 = scmp.eq.s32.totalorder %s18, 1
      %p78 = scmp.ne.s32.totalorder %s73, %s75
      %p79 = scmp.eq.s32.totalorder %s18, 0
      %p80 = por %p78, %p79
      %p81 = scmp.ne.s32.totalorder %s73, %s75
      %p82 = scmp.eq.s32.totalorder %s23, 1
      %p83 = por %p81, %p82
      %p84 = scmp.ne.s32.totalorder %s75, %s76
      %p85 = scmp.eq.s32.totalorder %s23, 0
      %p86 = por %p84, %p85
      %p87 = scmp.ne.s32.totalorder %s75, %s76
      %p88 = scmp.eq.s32.totalorder %s24, 1
      %p89 = por %p87, %p88
      %p91 = scmp.ne.s32.totalorder %s76, %s90
      %p92 = scmp.eq.s32.totalorder %s24, 0
      %p93 = por %p91, %p92
      %s95 = sadd.s32 %s94, 1
      %p98 = scmp.eq.s32.totalorder %s18, 1
      %p99 = scmp.ne.s32.totalorder %s94, %s96
      %p100 = scmp.eq.s32.totalorder %s18, 0
      %p101 = por %p99, %p100
      %p102 = scmp.ne.s32.totalorder %s94, %s96
      %p103 = scmp.eq.s32.totalorder %s23, 1
      %p104 = por %p102, %p103
      %p105 = scmp.ne.s32.totalorder %s96, %s97
      %p106 = scmp.eq.s32.totalorder %s23, 0
      %p107 = por %p105, %p106
      %p108 = scmp.ne.s32.totalorder %s96, %s97
      %p109 = scmp.eq.s32.totalorder %s24, 1
      %p110 = por %p108, %p109
      %p112 = scmp.ne.s32.totalorder %s97, %s111
      %p113 = scmp.eq.s32.totalorder %s24, 0
      %p114 = por %p112, %p113
      %s116 = sadd.s32 %s115, 1
      %p119 = scmp.eq.s32.totalorder %s18, 1
      %p120 = scmp.ne.s32.totalorder %s115, %s117
      %p121 = scmp.eq.s32.totalorder %s18, 0
      %p122 = por %p120, %p121
      %p123 = scmp.ne.s32.totalorder %s115, %s117
      %p124 = scmp.eq.s32.totalorder %s23, 1
      %p125 = por %p123, %p124
      %p126 = scmp.ne.s32.totalorder %s117, %s118
      %p127 = scmp.eq.s32.totalorder %s23, 0
      %p128 = por %p126, %p127
      %p129 = scmp.ne.s32.totalorder %s117, %s118
      %p130 = scmp.eq.s32.totalorder %s24, 1
      %p131 = por %p129, %p130
      %p133 = scmp.ne.s32.totalorder %s118, %s132
      %p134 = scmp.eq.s32.totalorder %s24, 0
      %p135 = por %p133, %p134
      %s137 = sadd.s32 %s136, 1
      %p140 = scmp.eq.s32.totalorder %s18, 1
      %p141 = scmp.ne.s32.totalorder %s136, %s138
      %p142 = scmp.eq.s32.totalorder %s18, 0
      %p143 = por %p141, %p142
      %p144 = scmp.ne.s32.totalorder %s136, %s138
      %p145 = scmp.eq.s32.totalorder %s23, 1
      %p146 = por %p144, %p145
      %p147 = scmp.ne.s32.totalorder %s138, %s139
      %p148 = scmp.eq.s32.totalorder %s23, 0
      %p149 = por %p147, %p148
      %p150 = scmp.ne.s32.totalorder %s138, %s139
      %p151 = scmp.eq.s32.totalorder %s24, 1
      %p152 = por %p150, %p151
      %p154 = scmp.ne.s32.totalorder %s139, %s153
      %p155 = scmp.eq.s32.totalorder %s24, 0
      %p156 = por %p154, %p155
      %s158 = sadd.s32 %s157, 1
      %p161 = scmp.eq.s32.totalorder %s18, 1
      %p162 = scmp.ne.s32.totalorder %s157, %s159
      %p163 = scmp.eq.s32.totalorder %s18, 0
      %p164 = por %p162, %p163
      %p165 = scmp.ne.s32.totalorder %s157, %s159
      %p166 = scmp.eq.s32.totalorder %s23, 1
      %p167 = por %p165, %p166
      %p168 = scmp.ne.s32.totalorder %s159, %s160
      %p169 = scmp.eq.s32.totalorder %s23, 0
      %p170 = por %p168, %p169
      %p171 = scmp.ne.s32.totalorder %s159, %s160
      %p172 = scmp.eq.s32.totalorder %s24, 1
      %p173 = por %p171, %p172
      %p175 = scmp.ne.s32.totalorder %s160, %s174
      %p176 = scmp.eq.s32.totalorder %s24, 0
      %p177 = por %p175, %p176
      %s179 = sadd.s32 %s178, 1
      %p182 = scmp.eq.s32.totalorder %s18, 1
      %p183 = scmp.ne.s32.totalorder %s178, %s180
      %p184 = scmp.eq.s32.totalorder %s18, 0
      %p185 = por %p183, %p184
      %p186 = scmp.ne.s32.totalorder %s178, %s180
      %p187 = scmp.eq.s32.totalorder %s23, 1
      %p188 = por %p186, %p187
      %p189 = scmp.ne.s32.totalorder %s180, %s181
      %p190 = scmp.eq.s32.totalorder %s23, 0
      %p191 = por %p189, %p190
      %p192 = scmp.ne.s32.totalorder %s180, %s181
      %p193 = scmp.eq.s32.totalorder %s24, 1
      %p194 = por %p192, %p193
      %p196 = scmp.ne.s32.totalorder %s181, %s195
      %p197 = scmp.eq.s32.totalorder %s24, 0
      %p198 = por %p196, %p197
      %s199 = ssub.s32 %s18, %s25
      %p200 = scmp.eq.s32.totalorder %s199, 0
      %s202 = sadd.s32 %s201, 1
      %s203 = scalar_select %p200, %s201, %s202
      %p206 = pneg %p200
      %p207 = scmp.eq.s32.totalorder %s18, 1
      %p208 = por %p206, %p207
      %p209 = scmp.ne.s32.totalorder %s201, %s204
      %p210 = scmp.eq.s32.totalorder %s18, 0
      %p211 = por %p209, %p210
      %p212 = scmp.ne.s32.totalorder %s201, %s204
      %p213 = scmp.eq.s32.totalorder %s23, 1
      %p214 = por %p212, %p213
      %p215 = scmp.ne.s32.totalorder %s204, %s205
      %p216 = scmp.eq.s32.totalorder %s23, 0
      %p217 = por %p215, %p216
      %p218 = scmp.ne.s32.totalorder %s204, %s205
      %p219 = scmp.eq.s32.totalorder %s24, 1
      %p220 = por %p218, %p219
      %p222 = scmp.ne.s32.totalorder %s205, %s221
      %p223 = scmp.eq.s32.totalorder %s24, 0
      %p224 = por %p222, %p223
      %p225 = scmp.le.s32.totalorder 1, %s18
      %p226 = scmp.lt.s32.totalorder %s18, 3
      %p227 = pnand %p225, %p226
      %p228 = pneg %p227
      // Predicated region
      $region9: #{tpu_custom_call.1} parent=5 // pred_check
        _
      $region10: #{tpu_custom_call.1} parent=5 // pred_check_branch
        %230 = sbr.rel (%p227) target = $region12
      $region11: #{tpu_custom_call.1} parent=5 // pred_region
        %s231 = ssub.s32 %s18, 1
        // Predicated region
        $region13: #{tpu_custom_call.1} parent=11 // pred_check
          %p232 = pneg %p65
        $region14: #{tpu_custom_call.1} parent=11 // pred_check_branch
          %234 = sbr.rel (%p232) target = $region16
        $region15: #{tpu_custom_call.1} parent=11 // pred_region
          %s236 = ssub.s32 2048, 2048
          %237 = vsyncadd [#allocation5], %s236
          %s238 = sshll.u32 [#allocation4], 4
          %s239 = int_to_ptr.vmem [resolvable:$true] %s238
          %244 = dma.hbm_to_vmem [thread:$0]  %s1, 2048, %s239, [#allocation5], 128, 128, 8
        $region16: #{tpu_custom_call.1} parent=11 // pred_fallthru
          _
        // Predicated region
        $region17: #{tpu_custom_call.1} parent=11 // pred_check
          %p245 = pneg %p86
        $region18: #{tpu_custom_call.1} parent=11 // pred_check_branch
          %247 = sbr.rel (%p245) target = $region20
        $region19: #{tpu_custom_call.1} parent=11 // pred_region
          _
        $region20: #{tpu_custom_call.1} parent=11 // pred_fallthru
          _
        // Predicated region
        $region21: #{tpu_custom_call.1} parent=11 // pred_check
          %p248 = pneg %p107
        $region22: #{tpu_custom_call.1} parent=11 // pred_check_branch
          %250 = sbr.rel (%p248) target = $region24
        $region23: #{tpu_custom_call.1} parent=11 // pred_region
          %s252 = ssub.s32 2048, 2048
          %253 = vsyncadd [#allocation5], %s252
          %s254 = sshll.u32 [#allocation6], 4
          %s255 = int_to_ptr.vmem [resolvable:$true] %s254
          %260 = dma.hbm_to_vmem [thread:$0]  %s3, 2048, %s255, [#allocation5], 64, 64, 4
        $region24: #{tpu_custom_call.1} parent=11 // pred_fallthru
          _
        // Predicated region
        $region25: #{tpu_custom_call.1} parent=11 // pred_check
          %p261 = pneg %p128
        $region26: #{tpu_custom_call.1} parent=11 // pred_check_branch
          %263 = sbr.rel (%p261) target = $region28
        $region27: #{tpu_custom_call.1} parent=11 // pred_region
          _
        $region28: #{tpu_custom_call.1} parent=11 // pred_fallthru
          _
        // Predicated region
        $region29: #{tpu_custom_call.1} parent=11 // pred_check
          %p264 = pneg %p149
        $region30: #{tpu_custom_call.1} parent=11 // pred_check_branch
          %266 = sbr.rel (%p264) target = $region32
        $region31: #{tpu_custom_call.1} parent=11 // pred_region
          _
        $region32: #{tpu_custom_call.1} parent=11 // pred_fallthru
          _
        // Predicated region
        $region33: #{tpu_custom_call.1} parent=11 // pred_check
          %p267 = pneg %p170
        $region34: #{tpu_custom_call.1} parent=11 // pred_check_branch
          %269 = sbr.rel (%p267) target = $region36
        $region35: #{tpu_custom_call.1} parent=11 // pred_region
          _
        $region36: #{tpu_custom_call.1} parent=11 // pred_fallthru
          _
        // Predicated region
        $region37: #{tpu_custom_call.1} parent=11 // pred_check
          %p270 = pneg %p191
        $region38: #{tpu_custom_call.1} parent=11 // pred_check_branch
          %272 = sbr.rel (%p270) target = $region40
        $region39: #{tpu_custom_call.1} parent=11 // pred_region
          _
        $region40: #{tpu_custom_call.1} parent=11 // pred_fallthru
          _
      $region12: #{tpu_custom_call.1} parent=5 // pred_fallthru
        _
      %p273 = scmp.lt.s32.totalorder %s18, 2
      // Predicated region
      $region41: #{tpu_custom_call.1} parent=5 // pred_check
        %p274 = pneg %p273
      $region42: #{tpu_custom_call.1} parent=5 // pred_check_branch
        %276 = sbr.rel (%p274) target = $region44
      $region43: #{tpu_custom_call.1} parent=5 // pred_region
        // Predicated region
        $region45: #{tpu_custom_call.1} parent=43 // pred_check
          %p277 = pneg %p38
        $region46: #{tpu_custom_call.1} parent=43 // pred_check_branch
          %279 = sbr.rel (%p277) target = $region48
        $region47: #{tpu_custom_call.1} parent=43 // pred_region
          %s280 = sand.u32 %s28, 1
          %s281 = scalar_lea.sflag [#allocation3], %s280
          %s282 = sand.u32 %s28, 1
          %s283 = smul.addr %s282, 64
          %s284 = scalar_lea.vmem [#allocation2], %s283
          %s285 = smul.u32 16, %s18
          %s287 = ssub.s32 1024, 1024
          %288 = vsyncadd %s281, %s287
          %s289 = smul.addr %s285, 64
          %s290 = scalar_lea.hbm %s0, %s289
          %s291 = sshll.u32 %s284, 4
          %s292 = int_to_ptr.vmem [resolvable:$true] %s291
          %297 = dma.hbm_to_vmem [thread:$0]  %s290, 1024, %s292, %s281, 64, 64, 4
        $region48: #{tpu_custom_call.1} parent=43 // pred_fallthru
          _
      $region44: #{tpu_custom_call.1} parent=5 // pred_fallthru
        _
      %p298 = scmp.le.s32.totalorder 1, %s18
      %p299 = scmp.lt.s32.totalorder %s18, 3
      %p300 = pnand %p298, %p299
      %p301 = pneg %p300
      // Predicated region
      $region49: #{tpu_custom_call.1} parent=5 // pred_check
        _
      $region50: #{tpu_custom_call.1} parent=5 // pred_check_branch
        %303 = sbr.rel (%p300) target = $region52
      $region51: #{tpu_custom_call.1} parent=5 // pred_region
        %s304 = ssub.s32 %s18, 1
        %s305 = sand.u32 %s31, 1
        %s306 = scalar_lea.sflag [#allocation3], %s305
        %s307 = sand.u32 %s31, 1
        %s308 = smul.addr %s307, 64
        %s309 = scalar_lea.vmem [#allocation2], %s308
        // Predicated region
        $region53: #{tpu_custom_call.1} parent=51 // pred_check
          %p310 = pneg %p44
        $region54: #{tpu_custom_call.1} parent=51 // pred_check_branch
          %312 = sbr.rel (%p310) target = $region56
        $region55: #{tpu_custom_call.1} parent=51 // pred_region
          %313 = dma.done %s306, 1024
        $region56: #{tpu_custom_call.1} parent=51 // pred_fallthru
          _
        // Predicated region
        $region57: #{tpu_custom_call.1} parent=51 // pred_check
          %p314 = pneg %p65
        $region58: #{tpu_custom_call.1} parent=51 // pred_check_branch
          %316 = sbr.rel (%p314) target = $region60
        $region59: #{tpu_custom_call.1} parent=51 // pred_region
          %317 = dma.done [#allocation5], 2048
        $region60: #{tpu_custom_call.1} parent=51 // pred_fallthru
          _
        // Predicated region
        $region61: #{tpu_custom_call.1} parent=51 // pred_check
          %p318 = pneg %p107
        $region62: #{tpu_custom_call.1} parent=51 // pred_check_branch
          %320 = sbr.rel (%p318) target = $region64
        $region63: #{tpu_custom_call.1} parent=51 // pred_region
          %321 = dma.done [#allocation5], 2048
        $region64: #{tpu_custom_call.1} parent=51 // pred_fallthru
          _
        %s322 = sand.u32 %s31, 1
        %s323 = scalar_lea.sflag [#allocation3], %s322
        %s324 = sand.u32 %s31, 1
        %s325 = smul.addr %s324, 64
        %s326 = scalar_lea.vmem [#allocation2], %s325
        %p327 = pneg %p44
        %p328 = pneg %p41
        %p329 = pneg %p65
        %p330 = pneg %p62
        %p331 = pneg %p86
        %p332 = pneg %p83
        %p333 = pneg %p107
        %p334 = pneg %p104
        %p335 = pneg %p128
        %p336 = pneg %p125
        %p337 = pneg %p149
        %p338 = pneg %p146
        %p339 = pneg %p170
        %p340 = pneg %p167
        %p341 = pneg %p191
        %p342 = pneg %p188
        %p343 = pneg %p217
        %p344 = pneg %p214
        %s345 = smul.u32 16, %s23
        %p346 = scmp.lt.s32.totalorder %s345, 31
        %s347 = scalar_select %p346, %s345, 31
        %s348 = smul.addr %s347, 8
        %s349 = scalar_lea.vmem %s8, %s348
        %s350 = smul.u32 16, %s23
        %s351 = smul.u32 16, %s23
        %p352 = scmp.lt.s32.totalorder %s351, 31
        %s353 = scalar_select %p352, %s351, 31
        %s354 = smul.addr %s353, 8
        %s355 = scalar_lea.vmem %s8, %s354
        %s356 = smul.u32 16, %s23
        %v358 = vld [vmem:[%s309] sm:$0xf]
        %v359 = vld [vmem:[%s309 + $0x4] sm:$0xf]
        %v360 = vld [vmem:[%s309 + $0x8] sm:$0xf]
        %v361 = vld [vmem:[%s309 + $0xc] sm:$0xf]
        %v362 = vld [vmem:[%s309 + $0x10] sm:$0xf]
        %v363 = vld [vmem:[%s309 + $0x14] sm:$0xf]
        %v364 = vld [vmem:[%s309 + $0x18] sm:$0xf]
        %v365 = vld [vmem:[%s309 + $0x1c] sm:$0xf]
        %v366 = vld [vmem:[%s309 + $0x20] sm:$0xf]
        %v367 = vld [vmem:[%s309 + $0x24] sm:$0xf]
        %v368 = vld [vmem:[%s309 + $0x28] sm:$0xf]
        %v369 = vld [vmem:[%s309 + $0x2c] sm:$0xf]
        %v370 = vld [vmem:[%s309 + $0x30] sm:$0xf]
        %v371 = vld [vmem:[%s309 + $0x34] sm:$0xf]
        %v372 = vld [vmem:[%s309 + $0x38] sm:$0xf]
        %v373 = vld [vmem:[%s309 + $0x3c] sm:$0xf]
        %v374 = vld [vmem:[#allocation4] sm:$0xff]
        %v375 = vld [vmem:[#allocation4 + $0x8] sm:$0xff]
        %v376 = vld [vmem:[#allocation4 + $0x10] sm:$0xff]
        %v377 = vld [vmem:[#allocation4 + $0x18] sm:$0xff]
        %v378 = vld [vmem:[#allocation4 + $0x20] sm:$0xff]
        %v379 = vld [vmem:[#allocation4 + $0x28] sm:$0xff]
        %v380 = vld [vmem:[#allocation4 + $0x30] sm:$0xff]
        %v381 = vld [vmem:[#allocation4 + $0x38] sm:$0xff]
        %v382 = vld [vmem:[#allocation4 + $0x40] sm:$0xff]
        %v383 = vld [vmem:[#allocation4 + $0x48] sm:$0xff]
        %v384 = vld [vmem:[#allocation4 + $0x50] sm:$0xff]
        %v385 = vld [vmem:[#allocation4 + $0x58] sm:$0xff]
        %v386 = vld [vmem:[#allocation4 + $0x60] sm:$0xff]
        %v387 = vld [vmem:[#allocation4 + $0x68] sm:$0xff]
        %v388 = vld [vmem:[#allocation4 + $0x70] sm:$0xff]
        %v389 = vld [vmem:[#allocation4 + $0x78] sm:$0xff]
        %v390 = vld [vmem:[%s2] sm:$0x3]
        %v392 = vlaneseq
        %v393 = vshrl.u32 %v392, 7
        %v394 = vsub.s32 0, %v393
        %v395 = vrot.slane %v390, %v394
        %v396 = vlaneseq
        %v397 = vshrl.u32 %v396, 7
        %v398 = vsub.s32 1, %v397
        %v399 = vrot.slane %v390, %v398
        %v418 = vunpack.c.l.b16 %v358
        %v419 = vunpack.c.l.b16 %v359
        %v420 = vunpack.c.l.b16 %v360
        %v421 = vunpack.c.l.b16 %v361
        %v422 = vunpack.c.l.b16 %v362
        %v423 = vunpack.c.l.b16 %v363
        %v424 = vunpack.c.l.b16 %v364
        %v425 = vunpack.c.l.b16 %v365
        %v426 = vunpack.c.l.b16 %v366
        %v427 = vunpack.c.l.b16 %v367
        %v428 = vunpack.c.l.b16 %v368
        %v429 = vunpack.c.l.b16 %v369
        %v430 = vunpack.c.l.b16 %v370
        %v431 = vunpack.c.l.b16 %v371
        %v432 = vunpack.c.l.b16 %v372
        %v433 = vunpack.c.l.b16 %v373
        %v434 = vpack.c.b16 %v419, %v418
        %v435 = vpack.c.b16 %v421, %v420
        %v436 = vpack.c.b16 %v423, %v422
        %v437 = vpack.c.b16 %v425, %v424
        %v438 = vpack.c.b16 %v427, %v426
        %v439 = vpack.c.b16 %v429, %v428
        %v440 = vpack.c.b16 %v431, %v430
        %v441 = vpack.c.b16 %v433, %v432
        %v466 = vunpack.c.l.b16 %v374
        %v467 = vunpack.c.h.b16 %v374
        %v468 = vunpack.c.l.b16 %v375
        %v469 = vunpack.c.h.b16 %v375
        %v470 = vunpack.c.l.b16 %v376
        %v471 = vunpack.c.h.b16 %v376
        %v472 = vunpack.c.l.b16 %v377
        %v473 = vunpack.c.h.b16 %v377
        %v474 = vunpack.c.l.b16 %v378
        %v475 = vunpack.c.h.b16 %v378
        %v476 = vunpack.c.l.b16 %v379
        %v477 = vunpack.c.h.b16 %v379
        %v478 = vunpack.c.l.b16 %v380
        %v479 = vunpack.c.h.b16 %v380
        %v480 = vunpack.c.l.b16 %v381
        %v481 = vunpack.c.h.b16 %v381
        %v482 = vunpack.c.l.b16 %v382
        %v483 = vunpack.c.h.b16 %v382
        %v484 = vunpack.c.l.b16 %v383
        %v485 = vunpack.c.h.b16 %v383
        %v486 = vunpack.c.l.b16 %v384
        %v487 = vunpack.c.h.b16 %v384
        %v488 = vunpack.c.l.b16 %v385
        %v489 = vunpack.c.h.b16 %v385
        %v490 = vunpack.c.l.b16 %v386
        %v491 = vunpack.c.h.b16 %v386
        %v492 = vunpack.c.l.b16 %v387
        %v493 = vunpack.c.h.b16 %v387
        %v494 = vunpack.c.l.b16 %v388
        %v495 = vunpack.c.h.b16 %v388
        %v496 = vunpack.c.l.b16 %v389
        %v497 = vunpack.c.h.b16 %v389
        %v498 = vpack.c.b16 %v468, %v466
        %v499 = vpack.c.b16 %v469, %v467
        %v500 = vpack.c.b16 %v472, %v470
        %v501 = vpack.c.b16 %v473, %v471
        %v502 = vpack.c.b16 %v476, %v474
        %v503 = vpack.c.b16 %v477, %v475
        %v504 = vpack.c.b16 %v480, %v478
        %v505 = vpack.c.b16 %v481, %v479
        %v506 = vpack.c.b16 %v484, %v482
        %v507 = vpack.c.b16 %v485, %v483
        %v508 = vpack.c.b16 %v488, %v486
        %v509 = vpack.c.b16 %v489, %v487
        %v510 = vpack.c.b16 %v492, %v490
        %v511 = vpack.c.b16 %v493, %v491
        %v512 = vpack.c.b16 %v496, %v494
        %v513 = vpack.c.b16 %v497, %v495
        %530 = vmatprep.subr.bf16.mxu0 %v499
        %531 = vmatpush1.bf16.msra.mxu0 %v498
        %532 = vmatprep.subr.bf16.mxu0 %v501
        %533 = vmatpush1.bf16.msra.mxu0 %v500
        %534 = vmatprep.subr.bf16.mxu0 %v503
        %535 = vmatpush1.bf16.msra.mxu0 %v502
        %536 = vmatprep.subr.bf16.mxu0 %v505
        %537 = vmatpush1.bf16.msra.mxu0 %v504
        %538 = vmatprep.subr.bf16.mxu0 %v507
        %539 = vmatpush1.bf16.msra.mxu0 %v506
        %540 = vmatprep.subr.bf16.mxu0 %v509
        %541 = vmatpush1.bf16.msra.mxu0 %v508
        %542 = vmatprep.subr.bf16.mxu0 %v511
        %543 = vmatpush1.bf16.msra.mxu0 %v510
        %544 = vmatprep.subr.bf16.mxu0 %v513
        %545 = vmatpush1.bf16.msra.mxu0 %v512
        %546 = vmatprep.subr.bf16.mxu0 0
        %547 = vmatpush1.bf16.msra.mxu0 0
        %548 = vmatprep.subr.bf16.mxu0 0
        %549 = vmatpush1.bf16.msra.mxu0 0
        %550 = vmatprep.subr.bf16.mxu0 0
        %551 = vmatpush1.bf16.msra.mxu0 0
        %552 = vmatprep.subr.bf16.mxu0 0
        %553 = vmatpush1.bf16.msra.mxu0 0
        %554 = vmatprep.subr.bf16.mxu0 0
        %555 = vmatpush1.bf16.msra.mxu0 0
        %556 = vmatprep.subr.bf16.mxu0 0
        %557 = vmatpush1.bf16.msra.mxu0 0
        %558 = vmatprep.subr.bf16.mxu0 0
        %559 = vmatpush1.bf16.msra.mxu0 0
        %560 = vmatprep.subr.bf16.mxu0 0
        %561 = vmatpush1.bf16.msra.mxu0 0
        %562 = vmatprep.mubr.bf16.mxu0 0
        %563 = vmatmul.mubr.bf16.gmra.mrb[0].mxu0 %v434
        %v564 = vpop.f32.mrb[0].mxu0
        %v565 = vadd.f32 %v395, %v564
        %v566 = vpop.f32.mrb[0].mxu0
        %v567 = vadd.f32 %v399, %v566
        %v568 = vpop.f32.mrb[0].mxu0
        %v569 = vadd.f32 %v395, %v568
        %v570 = vpop.f32.mrb[0].mxu0
        %v571 = vadd.f32 %v399, %v570
        %572 = vmatprep.mubr.bf16.mxu0 0
        %573 = vmatmul.mubr.bf16.gmra.mrb[0].mxu0 %v435
        %v574 = vpop.f32.mrb[0].mxu0
        %v575 = vadd.f32 %v395, %v574
        %v576 = vpop.f32.mrb[0].mxu0
        %v577 = vadd.f32 %v399, %v576
        %v578 = vpop.f32.mrb[0].mxu0
        %v579 = vadd.f32 %v395, %v578
        %v580 = vpop.f32.mrb[0].mxu0
        %v581 = vadd.f32 %v399, %v580
        %582 = vmatprep.mubr.bf16.mxu0 0
        %583 = vmatmul.mubr.bf16.gmra.mrb[0].mxu0 %v436
        %v584 = vpop.f32.mrb[0].mxu0
        %v585 = vadd.f32 %v395, %v584
        %v586 = vpop.f32.mrb[0].mxu0
        %v587 = vadd.f32 %v399, %v586
        %v588 = vpop.f32.mrb[0].mxu0
        %v589 = vadd.f32 %v395, %v588
        %v590 = vpop.f32.mrb[0].mxu0
        %v591 = vadd.f32 %v399, %v590
        %592 = vmatprep.mubr.bf16.mxu0 0
        %593 = vmatmul.mubr.bf16.gmra.mrb[0].mxu0 %v437
        %v594 = vpop.f32.mrb[0].mxu0
        %v595 = vadd.f32 %v395, %v594
        %v596 = vpop.f32.mrb[0].mxu0
        %v597 = vadd.f32 %v399, %v596
        %v598 = vpop.f32.mrb[0].mxu0
        %v599 = vadd.f32 %v395, %v598
        %v600 = vpop.f32.mrb[0].mxu0
        %v601 = vadd.f32 %v399, %v600
        %602 = vmatprep.mubr.bf16.mxu0 0
        %603 = vmatmul.mubr.bf16.gmra.mrb[0].mxu0 %v438
        %v604 = vpop.f32.mrb[0].mxu0
        %v605 = vadd.f32 %v395, %v604
        %v606 = vpop.f32.mrb[0].mxu0
        %v607 = vadd.f32 %v399, %v606
        %v608 = vpop.f32.mrb[0].mxu0
        %v609 = vadd.f32 %v395, %v608
        %v610 = vpop.f32.mrb[0].mxu0
        %v611 = vadd.f32 %v399, %v610
        %612 = vmatprep.mubr.bf16.mxu0 0
        %613 = vmatmul.mubr.bf16.gmra.mrb[0].mxu0 %v439
        %v614 = vpop.f32.mrb[0].mxu0
        %v615 = vadd.f32 %v395, %v614
        %v616 = vpop.f32.mrb[0].mxu0
        %v617 = vadd.f32 %v399, %v616
        %v618 = vpop.f32.mrb[0].mxu0
        %v619 = vadd.f32 %v395, %v618
        %v620 = vpop.f32.mrb[0].mxu0
        %v621 = vadd.f32 %v399, %v620
        %622 = vmatprep.mubr.bf16.mxu0 0
        %623 = vmatmul.mubr.bf16.gmra.mrb[0].mxu0 %v440
        %v624 = vpop.f32.mrb[0].mxu0
        %v625 = vadd.f32 %v395, %v624
        %v626 = vpop.f32.mrb[0].mxu0
        %v627 = vadd.f32 %v399, %v626
        %v628 = vpop.f32.mrb[0].mxu0
        %v629 = vadd.f32 %v395, %v628
        %v630 = vpop.f32.mrb[0].mxu0
        %v631 = vadd.f32 %v399, %v630
        %632 = vmatprep.mubr.bf16.mxu0 0
        %633 = vmatmul.mubr.bf16.gmra.mrb[0].mxu0 %v441
        %v634 = vpop.f32.mrb[0].mxu0
        %v635 = vadd.f32 %v395, %v634
        %v636 = vpop.f32.mrb[0].mxu0
        %v637 = vadd.f32 %v399, %v636
        %v638 = vpop.f32.mrb[0].mxu0
        %v639 = vadd.f32 %v395, %v638
        %v640 = vpop.f32.mrb[0].mxu0
        %v641 = vadd.f32 %v399, %v640
        %642 = vdwg.mxu0
        %v643 = vmax.f32 %v565, 0.0
        %v644 = vmax.f32 %v567, 0.0
        %v645 = vmax.f32 %v569, 0.0
        %v646 = vmax.f32 %v571, 0.0
        %v647 = vmax.f32 %v575, 0.0
        %v648 = vmax.f32 %v577, 0.0
        %v649 = vmax.f32 %v579, 0.0
        %v650 = vmax.f32 %v581, 0.0
        %v651 = vmax.f32 %v585, 0.0
        %v652 = vmax.f32 %v587, 0.0
        %v653 = vmax.f32 %v589, 0.0
        %v654 = vmax.f32 %v591, 0.0
        %v655 = vmax.f32 %v595, 0.0
        %v656 = vmax.f32 %v597, 0.0
        %v657 = vmax.f32 %v599, 0.0
        %v658 = vmax.f32 %v601, 0.0
        %v659 = vmax.f32 %v605, 0.0
        %v660 = vmax.f32 %v607, 0.0
        %v661 = vmax.f32 %v609, 0.0
        %v662 = vmax.f32 %v611, 0.0
        %v663 = vmax.f32 %v615, 0.0
        %v664 = vmax.f32 %v617, 0.0
        %v665 = vmax.f32 %v619, 0.0
        %v666 = vmax.f32 %v621, 0.0
        %v667 = vmax.f32 %v625, 0.0
        %v668 = vmax.f32 %v627, 0.0
        %v669 = vmax.f32 %v629, 0.0
        %v670 = vmax.f32 %v631, 0.0
        %v671 = vmax.f32 %v635, 0.0
        %v672 = vmax.f32 %v637, 0.0
        %v673 = vmax.f32 %v639, 0.0
        %v674 = vmax.f32 %v641, 0.0
        %v675 = vpack.c.bf16 %v645, %v643
        %v676 = vpack.c.bf16 %v646, %v644
        %v677 = vpack.c.bf16 %v649, %v647
        %v678 = vpack.c.bf16 %v650, %v648
        %v679 = vpack.c.bf16 %v653, %v651
        %v680 = vpack.c.bf16 %v654, %v652
        %v681 = vpack.c.bf16 %v657, %v655
        %v682 = vpack.c.bf16 %v658, %v656
        %v683 = vpack.c.bf16 %v661, %v659
        %v684 = vpack.c.bf16 %v662, %v660
        %v685 = vpack.c.bf16 %v665, %v663
        %v686 = vpack.c.bf16 %v666, %v664
        %v687 = vpack.c.bf16 %v669, %v667
        %v688 = vpack.c.bf16 %v670, %v668
        %v689 = vpack.c.bf16 %v673, %v671
        %v690 = vpack.c.bf16 %v674, %v672
        %v691 = vld [vmem:[#allocation6] sm:$0xf]
        %v692 = vld [vmem:[#allocation6 + $0x4] sm:$0xf]
        %v693 = vld [vmem:[#allocation6 + $0x8] sm:$0xf]
        %v694 = vld [vmem:[#allocation6 + $0xc] sm:$0xf]
        %v695 = vld [vmem:[#allocation6 + $0x10] sm:$0xf]
        %v696 = vld [vmem:[#allocation6 + $0x14] sm:$0xf]
        %v697 = vld [vmem:[#allocation6 + $0x18] sm:$0xf]
        %v698 = vld [vmem:[#allocation6 + $0x1c] sm:$0xf]
        %v699 = vld [vmem:[#allocation6 + $0x20] sm:$0xf]
        %v700 = vld [vmem:[#allocation6 + $0x24] sm:$0xf]
        %v701 = vld [vmem:[#allocation6 + $0x28] sm:$0xf]
        %v702 = vld [vmem:[#allocation6 + $0x2c] sm:$0xf]
        %v703 = vld [vmem:[#allocation6 + $0x30] sm:$0xf]
        %v704 = vld [vmem:[#allocation6 + $0x34] sm:$0xf]
        %v705 = vld [vmem:[#allocation6 + $0x38] sm:$0xf]
        %v706 = vld [vmem:[#allocation6 + $0x3c] sm:$0xf]
        %v707 = vld [vmem:[#allocation6 + $0x40] sm:$0xf]
        %v708 = vld [vmem:[#allocation6 + $0x44] sm:$0xf]
        %v709 = vld [vmem:[#allocation6 + $0x48] sm:$0xf]
        %v710 = vld [vmem:[#allocation6 + $0x4c] sm:$0xf]
        %v711 = vld [vmem:[#allocation6 + $0x50] sm:$0xf]
        %v712 = vld [vmem:[#allocation6 + $0x54] sm:$0xf]
        %v713 = vld [vmem:[#allocation6 + $0x58] sm:$0xf]
        %v714 = vld [vmem:[#allocation6 + $0x5c] sm:$0xf]
        %v715 = vld [vmem:[#allocation6 + $0x60] sm:$0xf]
        %v716 = vld [vmem:[#allocation6 + $0x64] sm:$0xf]
        %v717 = vld [vmem:[#allocation6 + $0x68] sm:$0xf]
        %v718 = vld [vmem:[#allocation6 + $0x6c] sm:$0xf]
        %v719 = vld [vmem:[#allocation6 + $0x70] sm:$0xf]
        %v720 = vld [vmem:[#allocation6 + $0x74] sm:$0xf]
        %v721 = vld [vmem:[#allocation6 + $0x78] sm:$0xf]
        %v722 = vld [vmem:[#allocation6 + $0x7c] sm:$0xf]
        %v723 = vld [vmem:[%s4] sm:$0x1]
        %v725 = vlaneseq
        %v726 = vshrl.u32 %v725, 7
        %v727 = vsub.s32 0, %v726
        %v728 = vrot.slane %v723, %v727
        %v762 = vunpack.c.l.b16 %v691
        %v763 = vunpack.c.l.b16 %v692
        %v764 = vunpack.c.l.b16 %v693
        %v765 = vunpack.c.l.b16 %v694
        %v766 = vunpack.c.l.b16 %v695
        %v767 = vunpack.c.l.b16 %v696
        %v768 = vunpack.c.l.b16 %v697
        %v769 = vunpack.c.l.b16 %v698
        %v770 = vunpack.c.l.b16 %v699
        %v771 = vunpack.c.l.b16 %v700
        %v772 = vunpack.c.l.b16 %v701
        %v773 = vunpack.c.l.b16 %v702
        %v774 = vunpack.c.l.b16 %v703
        %v775 = vunpack.c.l.b16 %v704
        %v776 = vunpack.c.l.b16 %v705
        %v777 = vunpack.c.l.b16 %v706
        %v778 = vunpack.c.l.b16 %v707
        %v779 = vunpack.c.l.b16 %v708
        %v780 = vunpack.c.l.b16 %v709
        %v781 = vunpack.c.l.b16 %v710
        %v782 = vunpack.c.l.b16 %v711
        %v783 = vunpack.c.l.b16 %v712
        %v784 = vunpack.c.l.b16 %v713
        %v785 = vunpack.c.l.b16 %v714
        %v786 = vunpack.c.l.b16 %v715
        %v787 = vunpack.c.l.b16 %v716
        %v788 = vunpack.c.l.b16 %v717
        %v789 = vunpack.c.l.b16 %v718
        %v790 = vunpack.c.l.b16 %v719
        %v791 = vunpack.c.l.b16 %v720
        %v792 = vunpack.c.l.b16 %v721
        %v793 = vunpack.c.l.b16 %v722
        %v794 = vpack.c.b16 %v763, %v762
        %v795 = vpack.c.b16 %v765, %v764
        %v796 = vpack.c.b16 %v767, %v766
        %v797 = vpack.c.b16 %v769, %v768
        %v798 = vpack.c.b16 %v771, %v770
        %v799 = vpack.c.b16 %v773, %v772
        %v800 = vpack.c.b16 %v775, %v774
        %v801 = vpack.c.b16 %v777, %v776
        %v802 = vpack.c.b16 %v779, %v778
        %v803 = vpack.c.b16 %v781, %v780
        %v804 = vpack.c.b16 %v783, %v782
        %v805 = vpack.c.b16 %v785, %v784
        %v806 = vpack.c.b16 %v787, %v786
        %v807 = vpack.c.b16 %v789, %v788
        %v808 = vpack.c.b16 %v791, %v790
        %v809 = vpack.c.b16 %v793, %v792
        %826 = vmatprep.subr.bf16.mxu0 0
        %827 = vmatpush1.bf16.msra.mxu0 %v794
        %828 = vmatprep.subr.bf16.mxu0 0
        %829 = vmatpush1.bf16.msra.mxu0 %v795
        %830 = vmatprep.subr.bf16.mxu0 0
        %831 = vmatpush1.bf16.msra.mxu0 %v796
        %832 = vmatprep.subr.bf16.mxu0 0
        %833 = vmatpush1.bf16.msra.mxu0 %v797
        %834 = vmatprep.subr.bf16.mxu0 0
        %835 = vmatpush1.bf16.msra.mxu0 %v798
        %836 = vmatprep.subr.bf16.mxu0 0
        %837 = vmatpush1.bf16.msra.mxu0 %v799
        %838 = vmatprep.subr.bf16.mxu0 0
        %839 = vmatpush1.bf16.msra.mxu0 %v800
        %840 = vmatprep.subr.bf16.mxu0 0
        %841 = vmatpush1.bf16.msra.mxu0 %v801
        %842 = vmatprep.subr.bf16.mxu0 0
        %843 = vmatpush1.bf16.msra.mxu0 %v802
        %844 = vmatprep.subr.bf16.mxu0 0
        %845 = vmatpush1.bf16.msra.mxu0 %v803
        %846 = vmatprep.subr.bf16.mxu0 0
        %847 = vmatpush1.bf16.msra.mxu0 %v804
        %848 = vmatprep.subr.bf16.mxu0 0
        %849 = vmatpush1.bf16.msra.mxu0 %v805
        %850 = vmatprep.subr.bf16.mxu0 0
        %851 = vmatpush1.bf16.msra.mxu0 %v806
        %852 = vmatprep.subr.bf16.mxu0 0
        %853 = vmatpush1.bf16.msra.mxu0 %v807
        %854 = vmatprep.subr.bf16.mxu0 0
        %855 = vmatpush1.bf16.msra.mxu0 %v808
        %856 = vmatprep.subr.bf16.mxu0 0
        %857 = vmatpush1.bf16.msra.mxu0 %v809
        %858 = vmatprep.mubr.bf16.mxu0 %v676
        %859 = vmatmul.mubr.bf16.gmra.mrb[0].mxu0 %v675
        %v860 = vpop.f32.mrb[0].mxu0
        %v861 = vadd.f32 %v728, %v860
        %v862 = vpop.f32.mrb[0].mxu0
        %v863 = vpop.f32.mrb[0].mxu0
        %v864 = vadd.f32 %v728, %v863
        %v865 = vpop.f32.mrb[0].mxu0
        %866 = vmatprep.mubr.bf16.mxu0 %v678
        %867 = vmatmul.mubr.bf16.gmra.mrb[0].mxu0 %v677
        %v868 = vpop.f32.mrb[0].mxu0
        %v869 = vadd.f32 %v728, %v868
        %v870 = vpop.f32.mrb[0].mxu0
        %v871 = vpop.f32.mrb[0].mxu0
        %v872 = vadd.f32 %v728, %v871
        %v873 = vpop.f32.mrb[0].mxu0
        %874 = vmatprep.mubr.bf16.mxu0 %v680
        %875 = vmatmul.mubr.bf16.gmra.mrb[0].mxu0 %v679
        %v876 = vpop.f32.mrb[0].mxu0
        %v877 = vadd.f32 %v728, %v876
        %v878 = vpop.f32.mrb[0].mxu0
        %v879 = vpop.f32.mrb[0].mxu0
        %v880 = vadd.f32 %v728, %v879
        %v881 = vpop.f32.mrb[0].mxu0
        %882 = vmatprep.mubr.bf16.mxu0 %v682
        %883 = vmatmul.mubr.bf16.gmra.mrb[0].mxu0 %v681
        %v884 = vpop.f32.mrb[0].mxu0
        %v885 = vadd.f32 %v728, %v884
        %v886 = vpop.f32.mrb[0].mxu0
        %v887 = vpop.f32.mrb[0].mxu0
        %v888 = vadd.f32 %v728, %v887
        %v889 = vpop.f32.mrb[0].mxu0
        %890 = vmatprep.mubr.bf16.mxu0 %v684
        %891 = vmatmul.mubr.bf16.gmra.mrb[0].mxu0 %v683
        %v892 = vpop.f32.mrb[0].mxu0
        %v893 = vadd.f32 %v728, %v892
        %v894 = vpop.f32.mrb[0].mxu0
        %v895 = vpop.f32.mrb[0].mxu0
        %v896 = vadd.f32 %v728, %v895
        %v897 = vpop.f32.mrb[0].mxu0
        %898 = vmatprep.mubr.bf16.mxu0 %v686
        %899 = vmatmul.mubr.bf16.gmra.mrb[0].mxu0 %v685
        %v900 = vpop.f32.mrb[0].mxu0
        %v901 = vadd.f32 %v728, %v900
        %v902 = vpop.f32.mrb[0].mxu0
        %v903 = vpop.f32.mrb[0].mxu0
        %v904 = vadd.f32 %v728, %v903
        %v905 = vpop.f32.mrb[0].mxu0
        %906 = vmatprep.mubr.bf16.mxu0 %v688
        %907 = vmatmul.mubr.bf16.gmra.mrb[0].mxu0 %v687
        %v908 = vpop.f32.mrb[0].mxu0
        %v909 = vadd.f32 %v728, %v908
        %v910 = vpop.f32.mrb[0].mxu0
        %v911 = vpop.f32.mrb[0].mxu0
        %v912 = vadd.f32 %v728, %v911
        %v913 = vpop.f32.mrb[0].mxu0
        %914 = vmatprep.mubr.bf16.mxu0 %v690
        %915 = vmatmul.mubr.bf16.gmra.mrb[0].mxu0 %v689
        %v916 = vpop.f32.mrb[0].mxu0
        %v917 = vadd.f32 %v728, %v916
        %v918 = vpop.f32.mrb[0].mxu0
        %v919 = vpop.f32.mrb[0].mxu0
        %v920 = vadd.f32 %v728, %v919
        %v921 = vpop.f32.mrb[0].mxu0
        %922 = vdwg.mxu0
        %v923 = vtanh.pop %v861
        %v924 = vtanh.pop %v864
        %v925 = vtanh.pop %v869
        %v926 = vtanh.pop %v872
        %v927 = vtanh.pop %v877
        %v928 = vtanh.pop %v880
        %v929 = vtanh.pop %v885
        %v930 = vtanh.pop %v888
        %v931 = vtanh.pop %v893
        %v932 = vtanh.pop %v896
        %v933 = vtanh.pop %v901
        %v934 = vtanh.pop %v904
        %v935 = vtanh.pop %v909
        %v936 = vtanh.pop %v912
        %v937 = vtanh.pop %v917
        %v938 = vtanh.pop %v920
        %v939 = vpack.c.bf16 %v924, %v923
        %v940 = vpack.c.bf16 %v926, %v925
        %v941 = vpack.c.bf16 %v928, %v927
        %v942 = vpack.c.bf16 %v930, %v929
        %v943 = vpack.c.bf16 %v932, %v931
        %v944 = vpack.c.bf16 %v934, %v933
        %v945 = vpack.c.bf16 %v936, %v935
        %v946 = vpack.c.bf16 %v938, %v937
        %v947 = vld [vmem:[%s5] sm:$0xf]
        %v948 = vld [vmem:[%s5 + $0x4] sm:$0xf]
        %v949 = vld [vmem:[%s5 + $0x8] sm:$0xf]
        %v950 = vld [vmem:[%s5 + $0xc] sm:$0xf]
        %v951 = vld [vmem:[%s5 + $0x10] sm:$0xf]
        %v952 = vld [vmem:[%s5 + $0x14] sm:$0xf]
        %v953 = vld [vmem:[%s5 + $0x18] sm:$0xf]
        %v954 = vld [vmem:[%s5 + $0x1c] sm:$0xf]
        %v955 = vld [vmem:[%s5 + $0x20] sm:$0xf]
        %v956 = vld [vmem:[%s5 + $0x24] sm:$0xf]
        %v957 = vld [vmem:[%s5 + $0x28] sm:$0xf]
        %v958 = vld [vmem:[%s5 + $0x2c] sm:$0xf]
        %v959 = vld [vmem:[%s5 + $0x30] sm:$0xf]
        %v960 = vld [vmem:[%s5 + $0x34] sm:$0xf]
        %v961 = vld [vmem:[%s5 + $0x38] sm:$0xf]
        %v962 = vld [vmem:[%s5 + $0x3c] sm:$0xf]
        %v963 = vld [vmem:[%s6] sm:$0x1]
        %v965 = vlaneseq
        %v966 = vshrl.u32 %v965, 7
        %v967 = vsub.s32 0, %v966
        %v968 = vrot.slane %v963, %v967
        %v986 = vunpack.c.l.b16 %v947
        %v987 = vunpack.c.l.b16 %v948
        %v988 = vunpack.c.l.b16 %v949
        %v989 = vunpack.c.l.b16 %v950
        %v990 = vunpack.c.l.b16 %v951
        %v991 = vunpack.c.l.b16 %v952
        %v992 = vunpack.c.l.b16 %v953
        %v993 = vunpack.c.l.b16 %v954
        %v994 = vunpack.c.l.b16 %v955
        %v995 = vunpack.c.l.b16 %v956
        %v996 = vunpack.c.l.b16 %v957
        %v997 = vunpack.c.l.b16 %v958
        %v998 = vunpack.c.l.b16 %v959
        %v999 = vunpack.c.l.b16 %v960
        %v1000 = vunpack.c.l.b16 %v961
        %v1001 = vunpack.c.l.b16 %v962
        %v1002 = vpack.c.b16 %v987, %v986
        %v1003 = vpack.c.b16 %v989, %v988
        %v1004 = vpack.c.b16 %v991, %v990
        %v1005 = vpack.c.b16 %v993, %v992
        %v1006 = vpack.c.b16 %v995, %v994
        %v1007 = vpack.c.b16 %v997, %v996
        %v1008 = vpack.c.b16 %v999, %v998
        %v1009 = vpack.c.b16 %v1001, %v1000
        %1018 = vmatprep.subr.bf16.mxu0 0
        %1019 = vmatpush1.bf16.msra.mxu0 %v1002
        %1020 = vmatprep.subr.bf16.mxu0 0
        %1021 = vmatpush1.bf16.msra.mxu0 %v1003
        %1022 = vmatprep.subr.bf16.mxu0 0
        %1023 = vmatpush1.bf16.msra.mxu0 %v1004
        %1024 = vmatprep.subr.bf16.mxu0 0
        %1025 = vmatpush1.bf16.msra.mxu0 %v1005
        %1026 = vmatprep.subr.bf16.mxu0 0
        %1027 = vmatpush1.bf16.msra.mxu0 %v1006
        %1028 = vmatprep.subr.bf16.mxu0 0
        %1029 = vmatpush1.bf16.msra.mxu0 %v1007
        %1030 = vmatprep.subr.bf16.mxu0 0
        %1031 = vmatpush1.bf16.msra.mxu0 %v1008
        %1032 = vmatprep.subr.bf16.mxu0 0
        %1033 = vmatpush1.bf16.msra.mxu0 %v1009
        %1034 = vmatprep.subr.bf16.mxu0 0
        %1035 = vmatpush1.bf16.msra.mxu0 0
        %1036 = vmatprep.subr.bf16.mxu0 0
        %1037 = vmatpush1.bf16.msra.mxu0 0
        %1038 = vmatprep.subr.bf16.mxu0 0
        %1039 = vmatpush1.bf16.msra.mxu0 0
        %1040 = vmatprep.subr.bf16.mxu0 0
        %1041 = vmatpush1.bf16.msra.mxu0 0
        %1042 = vmatprep.subr.bf16.mxu0 0
        %1043 = vmatpush1.bf16.msra.mxu0 0
        %1044 = vmatprep.subr.bf16.mxu0 0
        %1045 = vmatpush1.bf16.msra.mxu0 0
        %1046 = vmatprep.subr.bf16.mxu0 0
        %1047 = vmatpush1.bf16.msra.mxu0 0
        %1048 = vmatprep.subr.bf16.mxu0 0
        %1049 = vmatpush1.bf16.msra.mxu0 0
        %1050 = vmatprep.mubr.bf16.mxu0 0
        %1051 = vmatmul.mubr.bf16.gmra.mrb[0].mxu0 %v939
        %v1052 = vpop.f32.mrb[0].mxu0
        %v1053 = vadd.f32 %v968, %v1052
        %v1054 = vpop.f32.mrb[0].mxu0
        %v1055 = vpop.f32.mrb[0].mxu0
        %v1056 = vadd.f32 %v968, %v1055
        %v1057 = vpop.f32.mrb[0].mxu0
        %1058 = vmatprep.mubr.bf16.mxu0 0
        %1059 = vmatmul.mubr.bf16.gmra.mrb[0].mxu0 %v940
        %v1060 = vpop.f32.mrb[0].mxu0
        %v1061 = vadd.f32 %v968, %v1060
        %v1062 = vpop.f32.mrb[0].mxu0
        %v1063 = vpop.f32.mrb[0].mxu0
        %v1064 = vadd.f32 %v968, %v1063
        %v1065 = vpop.f32.mrb[0].mxu0
        %1066 = vmatprep.mubr.bf16.mxu0 0
        %1067 = vmatmul.mubr.bf16.gmra.mrb[0].mxu0 %v941
        %v1068 = vpop.f32.mrb[0].mxu0
        %v1069 = vadd.f32 %v968, %v1068
        %v1070 = vpop.f32.mrb[0].mxu0
        %v1071 = vpop.f32.mrb[0].mxu0
        %v1072 = vadd.f32 %v968, %v1071
        %v1073 = vpop.f32.mrb[0].mxu0
        %1074 = vmatprep.mubr.bf16.mxu0 0
        %1075 = vmatmul.mubr.bf16.gmra.mrb[0].mxu0 %v942
        %v1076 = vpop.f32.mrb[0].mxu0
        %v1077 = vadd.f32 %v968, %v1076
        %v1078 = vpop.f32.mrb[0].mxu0
        %v1079 = vpop.f32.mrb[0].mxu0
        %v1080 = vadd.f32 %v968, %v1079
        %v1081 = vpop.f32.mrb[0].mxu0
        %1082 = vmatprep.mubr.bf16.mxu0 0
        %1083 = vmatmul.mubr.bf16.gmra.mrb[0].mxu0 %v943
        %v1084 = vpop.f32.mrb[0].mxu0
        %v1085 = vadd.f32 %v968, %v1084
        %v1086 = vpop.f32.mrb[0].mxu0
        %v1087 = vpop.f32.mrb[0].mxu0
        %v1088 = vadd.f32 %v968, %v1087
        %v1089 = vpop.f32.mrb[0].mxu0
        %1090 = vmatprep.mubr.bf16.mxu0 0
        %1091 = vmatmul.mubr.bf16.gmra.mrb[0].mxu0 %v944
        %v1092 = vpop.f32.mrb[0].mxu0
        %v1093 = vadd.f32 %v968, %v1092
        %v1094 = vpop.f32.mrb[0].mxu0
        %v1095 = vpop.f32.mrb[0].mxu0
        %v1096 = vadd.f32 %v968, %v1095
        %v1097 = vpop.f32.mrb[0].mxu0
        %1098 = vmatprep.mubr.bf16.mxu0 0
        %1099 = vmatmul.mubr.bf16.gmra.mrb[0].mxu0 %v945
        %v1100 = vpop.f32.mrb[0].mxu0
        %v1101 = vadd.f32 %v968, %v1100
        %v1102 = vpop.f32.mrb[0].mxu0
        %v1103 = vpop.f32.mrb[0].mxu0
        %v1104 = vadd.f32 %v968, %v1103
        %v1105 = vpop.f32.mrb[0].mxu0
        %1106 = vmatprep.mubr.bf16.mxu0 0
        %1107 = vmatmul.mubr.bf16.gmra.mrb[0].mxu0 %v946
        %v1108 = vpop.f32.mrb[0].mxu0
        %v1109 = vadd.f32 %v968, %v1108
        %v1110 = vpop.f32.mrb[0].mxu0
        %v1111 = vpop.f32.mrb[0].mxu0
        %v1112 = vadd.f32 %v968, %v1111
        %v1113 = vpop.f32.mrb[0].mxu0
        %1114 = vdwg.mxu0
        %vm1115 = vcmask 261120
        %v1116 = vsel %vm1115, %v1053, -inf
        %1117 = vmax.xlane.f32.xlu0 %v1116
        %v1118 = vpop.xlane.xlu0 %1117
        %v1119 = vsel %vm1115, %v1056, -inf
        %1120 = vmax.xlane.f32.xlu0 %v1119
        %v1121 = vpop.xlane.xlu0 %1120
        %v1122 = vsel %vm1115, %v1061, -inf
        %1123 = vmax.xlane.f32.xlu0 %v1122
        %v1124 = vpop.xlane.xlu0 %1123
        %v1125 = vsel %vm1115, %v1064, -inf
        %1126 = vmax.xlane.f32.xlu0 %v1125
        %v1127 = vpop.xlane.xlu0 %1126
        %v1128 = vsel %vm1115, %v1069, -inf
        %1129 = vmax.xlane.f32.xlu0 %v1128
        %v1130 = vpop.xlane.xlu0 %1129
        %v1131 = vsel %vm1115, %v1072, -inf
        %1132 = vmax.xlane.f32.xlu0 %v1131
        %v1133 = vpop.xlane.xlu0 %1132
        %v1134 = vsel %vm1115, %v1077, -inf
        %1135 = vmax.xlane.f32.xlu0 %v1134
        %v1136 = vpop.xlane.xlu0 %1135
        %v1137 = vsel %vm1115, %v1080, -inf
        %1138 = vmax.xlane.f32.xlu0 %v1137
        %v1139 = vpop.xlane.xlu0 %1138
        %v1140 = vsel %vm1115, %v1085, -inf
        %1141 = vmax.xlane.f32.xlu0 %v1140
        %v1142 = vpop.xlane.xlu0 %1141
        %v1143 = vsel %vm1115, %v1088, -inf
        %1144 = vmax.xlane.f32.xlu0 %v1143
        %v1145 = vpop.xlane.xlu0 %1144
        %v1146 = vsel %vm1115, %v1093, -inf
        %1147 = vmax.xlane.f32.xlu0 %v1146
        %v1148 = vpop.xlane.xlu0 %1147
        %v1149 = vsel %vm1115, %v1096, -inf
        %1150 = vmax.xlane.f32.xlu0 %v1149
        %v1151 = vpop.xlane.xlu0 %1150
        %v1152 = vsel %vm1115, %v1101, -inf
        %1153 = vmax.xlane.f32.xlu0 %v1152
        %v1154 = vpop.xlane.xlu0 %1153
        %v1155 = vsel %vm1115, %v1104, -inf
        %1156 = vmax.xlane.f32.xlu0 %v1155
        %v1157 = vpop.xlane.xlu0 %1156
        %v1158 = vsel %vm1115, %v1109, -inf
        %1159 = vmax.xlane.f32.xlu0 %v1158
        %v1160 = vpop.xlane.xlu0 %1159
        %v1161 = vsel %vm1115, %v1112, -inf
        %1162 = vmax.xlane.f32.xlu0 %v1161
        %v1163 = vpop.xlane.xlu0 %1162
        %v1164 = vsub.f32 %v1053, %v1118
        %v1165 = vsub.f32 %v1056, %v1121
        %v1166 = vsub.f32 %v1061, %v1124
        %v1167 = vsub.f32 %v1064, %v1127
        %v1168 = vsub.f32 %v1069, %v1130
        %v1169 = vsub.f32 %v1072, %v1133
        %v1170 = vsub.f32 %v1077, %v1136
        %v1171 = vsub.f32 %v1080, %v1139
        %v1172 = vsub.f32 %v1085, %v1142
        %v1173 = vsub.f32 %v1088, %v1145
        %v1174 = vsub.f32 %v1093, %v1148
        %v1175 = vsub.f32 %v1096, %v1151
        %v1176 = vsub.f32 %v1101, %v1154
        %v1177 = vsub.f32 %v1104, %v1157
        %v1178 = vsub.f32 %v1109, %v1160
        %v1179 = vsub.f32 %v1112, %v1163
        %v1180 = vmul.f32 %v1164, 1.442695
        %v1181 = vpow.pop %v1180
        %v1182 = vmul.f32 %v1165, 1.442695
        %v1183 = vpow.pop %v1182
        %v1184 = vmul.f32 %v1166, 1.442695
        %v1185 = vpow.pop %v1184
        %v1186 = vmul.f32 %v1167, 1.442695
        %v1187 = vpow.pop %v1186
        %v1188 = vmul.f32 %v1168, 1.442695
        %v1189 = vpow.pop %v1188
        %v1190 = vmul.f32 %v1169, 1.442695
        %v1191 = vpow.pop %v1190
        %v1192 = vmul.f32 %v1170, 1.442695
        %v1193 = vpow.pop %v1192
        %v1194 = vmul.f32 %v1171, 1.442695
        %v1195 = vpow.pop %v1194
        %v1196 = vmul.f32 %v1172, 1.442695
        %v1197 = vpow.pop %v1196
        %v1198 = vmul.f32 %v1173, 1.442695
        %v1199 = vpow.pop %v1198
        %v1200 = vmul.f32 %v1174, 1.442695
        %v1201 = vpow.pop %v1200
        %v1202 = vmul.f32 %v1175, 1.442695
        %v1203 = vpow.pop %v1202
        %v1204 = vmul.f32 %v1176, 1.442695
        %v1205 = vpow.pop %v1204
        %v1206 = vmul.f32 %v1177, 1.442695
        %v1207 = vpow.pop %v1206
        %v1208 = vmul.f32 %v1178, 1.442695
        %v1209 = vpow.pop %v1208
        %v1210 = vmul.f32 %v1179, 1.442695
        %v1211 = vpow.pop %v1210
        %v1212 = vld [vmem:[%s7] sm:$0xff]
        %v1213 = vld [vmem:[%s7 + $0x8] sm:$0xff]
        %v1214 = vld [vmem:[%s7 + $0x10] sm:$0xff]
        %v1215 = vld [vmem:[%s7 + $0x18] sm:$0xff]
        %v1217 = vsel %vm1115, %v1181, 0
        %v1220 = vsel %vm1115, %v1183, 0
        %v1223 = vsel %vm1115, %v1185, 0
        %v1226 = vsel %vm1115, %v1187, 0
        %v1229 = vsel %vm1115, %v1189, 0
        %v1232 = vsel %vm1115, %v1191, 0
        %v1235 = vsel %vm1115, %v1193, 0
        %v1238 = vsel %vm1115, %v1195, 0
        %v1241 = vsel %vm1115, %v1197, 0
        %v1244 = vsel %vm1115, %v1199, 0
        %v1247 = vsel %vm1115, %v1201, 0
        %v1250 = vsel %vm1115, %v1203, 0
        %v1253 = vsel %vm1115, %v1205, 0
        %v1256 = vsel %vm1115, %v1207, 0
        %v1259 = vsel %vm1115, %v1209, 0
        %v1262 = vsel %vm1115, %v1211, 0
        %1264 = vmatprep.subr.mxu0 0.0
        %1265 = vmatpush1.msra.mxu0 %v1212
        %1266 = vmatprep.subr.mxu0 0.0
        %1267 = vmatpush1.msra.mxu0 %v1213
        %1268 = vmatprep.subr.mxu0 0.0
        %1269 = vmatpush1.msra.mxu0 %v1214
        %1270 = vmatprep.subr.mxu0 0.0
        %1271 = vmatpush1.msra.mxu0 %v1215
        %1272 = vmatprep.subr.mxu0 0.0
        %1273 = vmatpush1.msra.mxu0 0.0
        %1274 = vmatprep.subr.mxu0 0.0
        %1275 = vmatpush1.msra.mxu0 0.0
        %1276 = vmatprep.subr.mxu0 0.0
        %1277 = vmatpush1.msra.mxu0 0.0
        %1278 = vmatprep.subr.mxu0 0.0
        %1279 = vmatpush1.msra.mxu0 0.0
        %1280 = vmatprep.subr.mxu0 0.0
        %1281 = vmatpush1.msra.mxu0 0.0
        %1282 = vmatprep.subr.mxu0 0.0
        %1283 = vmatpush1.msra.mxu0 0.0
        %1284 = vmatprep.subr.mxu0 0.0
        %1285 = vmatpush1.msra.mxu0 0.0
        %1286 = vmatprep.subr.mxu0 0.0
        %1287 = vmatpush1.msra.mxu0 0.0
        %1288 = vmatprep.subr.mxu0 0.0
        %1289 = vmatpush1.msra.mxu0 0.0
        %1290 = vmatprep.subr.mxu0 0.0
        %1291 = vmatpush1.msra.mxu0 0.0
        %1292 = vmatprep.subr.mxu0 0.0
        %1293 = vmatpush1.msra.mxu0 0.0
        %1294 = vmatprep.subr.mxu0 0.0
        %1295 = vmatpush1.msra.mxu0 0.0
        %1296 = vmatprep.subr.mxu0 0.0
        %1297 = vmatpush1.msra.mxu0 0.0
        %1298 = vmatprep.subr.mxu0 0.0
        %1299 = vmatpush1.msra.mxu0 0.0
        %1300 = vmatprep.subr.mxu0 0.0
        %1301 = vmatpush1.msra.mxu0 0.0
        %1302 = vmatprep.subr.mxu0 0.0
        %1303 = vmatpush1.msra.mxu0 0.0
        %1304 = vmatprep.subr.mxu0 0.0
        %1305 = vmatpush1.msra.mxu0 0.0
        %1306 = vmatprep.subr.mxu0 0.0
        %1307 = vmatpush1.msra.mxu0 0.0
        %1308 = vmatprep.subr.mxu0 0.0
        %1309 = vmatpush1.msra.mxu0 0.0
        %1310 = vmatprep.subr.mxu0 0.0
        %1311 = vmatpush1.msra.mxu0 0.0
        %1312 = vmatprep.subr.mxu0 0.0
        %1313 = vmatpush1.msra.mxu0 0.0
        %1314 = vmatprep.subr.mxu0 0.0
        %1315 = vmatpush1.msra.mxu0 0.0
        %1316 = vmatprep.subr.mxu0 0.0
        %1317 = vmatpush1.msra.mxu0 0.0
        %1318 = vmatprep.subr.mxu0 0.0
        %1319 = vmatpush1.msra.mxu0 0.0
        %1320 = vmatprep.subr.mxu0 0.0
        %1321 = vmatpush1.msra.mxu0 0.0
        %1322 = vmatprep.subr.mxu0 0.0
        %1323 = vmatpush1.msra.mxu0 0.0
        %1324 = vmatprep.subr.mxu0 0.0
        %1325 = vmatpush1.msra.mxu0 0.0
        %1326 = vmatprep.subr.mxu0 0.0
        %1327 = vmatpush1.msra.mxu0 0.0
        %1328 = vmatprep.mubr.f32.mxu0 0.0
        %1329 = vmatmul.mubr.f32.gmra.mrb[0].mxu0 %v1217
        %v1330 = vpop.f32.mrb[0].mxu0
        %v1331 = vadd.f32 0.0, %v1330
        %v1332 = vpop.f32.mrb[0].mxu0
        %1333 = vmatprep.mubr.f32.mxu0 0.0
        %1334 = vmatmul.mubr.f32.gmra.mrb[0].mxu0 %v1220
        %v1335 = vpop.f32.mrb[0].mxu0
        %v1336 = vadd.f32 0.0, %v1335
        %v1337 = vpop.f32.mrb[0].mxu0
        %1338 = vmatprep.mubr.f32.mxu0 0.0
        %1339 = vmatmul.mubr.f32.gmra.mrb[0].mxu0 %v1223
        %v1340 = vpop.f32.mrb[0].mxu0
        %v1341 = vadd.f32 0.0, %v1340
        %v1342 = vpop.f32.mrb[0].mxu0
        %1343 = vmatprep.mubr.f32.mxu0 0.0
        %1344 = vmatmul.mubr.f32.gmra.mrb[0].mxu0 %v1226
        %v1345 = vpop.f32.mrb[0].mxu0
        %v1346 = vadd.f32 0.0, %v1345
        %v1347 = vpop.f32.mrb[0].mxu0
        %1348 = vmatprep.mubr.f32.mxu0 0.0
        %1349 = vmatmul.mubr.f32.gmra.mrb[0].mxu0 %v1229
        %v1350 = vpop.f32.mrb[0].mxu0
        %v1351 = vadd.f32 0.0, %v1350
        %v1352 = vpop.f32.mrb[0].mxu0
        %1353 = vmatprep.mubr.f32.mxu0 0.0
        %1354 = vmatmul.mubr.f32.gmra.mrb[0].mxu0 %v1232
        %v1355 = vpop.f32.mrb[0].mxu0
        %v1356 = vadd.f32 0.0, %v1355
        %v1357 = vpop.f32.mrb[0].mxu0
        %1358 = vmatprep.mubr.f32.mxu0 0.0
        %1359 = vmatmul.mubr.f32.gmra.mrb[0].mxu0 %v1235
        %v1360 = vpop.f32.mrb[0].mxu0
        %v1361 = vadd.f32 0.0, %v1360
        %v1362 = vpop.f32.mrb[0].mxu0
        %1363 = vmatprep.mubr.f32.mxu0 0.0
        %1364 = vmatmul.mubr.f32.gmra.mrb[0].mxu0 %v1238
        %v1365 = vpop.f32.mrb[0].mxu0
        %v1366 = vadd.f32 0.0, %v1365
        %v1367 = vpop.f32.mrb[0].mxu0
        %1368 = vmatprep.mubr.f32.mxu0 0.0
        %1369 = vmatmul.mubr.f32.gmra.mrb[0].mxu0 %v1241
        %v1370 = vpop.f32.mrb[0].mxu0
        %v1371 = vadd.f32 0.0, %v1370
        %v1372 = vpop.f32.mrb[0].mxu0
        %1373 = vmatprep.mubr.f32.mxu0 0.0
        %1374 = vmatmul.mubr.f32.gmra.mrb[0].mxu0 %v1244
        %v1375 = vpop.f32.mrb[0].mxu0
        %v1376 = vadd.f32 0.0, %v1375
        %v1377 = vpop.f32.mrb[0].mxu0
        %1378 = vmatprep.mubr.f32.mxu0 0.0
        %1379 = vmatmul.mubr.f32.gmra.mrb[0].mxu0 %v1247
        %v1380 = vpop.f32.mrb[0].mxu0
        %v1381 = vadd.f32 0.0, %v1380
        %v1382 = vpop.f32.mrb[0].mxu0
        %1383 = vmatprep.mubr.f32.mxu0 0.0
        %1384 = vmatmul.mubr.f32.gmra.mrb[0].mxu0 %v1250
        %v1385 = vpop.f32.mrb[0].mxu0
        %v1386 = vadd.f32 0.0, %v1385
        %v1387 = vpop.f32.mrb[0].mxu0
        %1388 = vmatprep.mubr.f32.mxu0 0.0
        %1389 = vmatmul.mubr.f32.gmra.mrb[0].mxu0 %v1253
        %v1390 = vpop.f32.mrb[0].mxu0
        %v1391 = vadd.f32 0.0, %v1390
        %v1392 = vpop.f32.mrb[0].mxu0
        %1393 = vmatprep.mubr.f32.mxu0 0.0
        %1394 = vmatmul.mubr.f32.gmra.mrb[0].mxu0 %v1256
        %v1395 = vpop.f32.mrb[0].mxu0
        %v1396 = vadd.f32 0.0, %v1395
        %v1397 = vpop.f32.mrb[0].mxu0
        %1398 = vmatprep.mubr.f32.mxu0 0.0
        %1399 = vmatmul.mubr.f32.gmra.mrb[0].mxu0 %v1259
        %v1400 = vpop.f32.mrb[0].mxu0
        %v1401 = vadd.f32 0.0, %v1400
        %v1402 = vpop.f32.mrb[0].mxu0
        %1403 = vmatprep.mubr.f32.mxu0 0.0
        %1404 = vmatmul.mubr.f32.gmra.mrb[0].mxu0 %v1262
        %v1405 = vpop.f32.mrb[0].mxu0
        %v1406 = vadd.f32 0.0, %v1405
        %v1407 = vpop.f32.mrb[0].mxu0
        %1408 = vdwg.mxu0
        %v1409 = vrcp.pop %v1331
        %v1410 = vmul.f32 %v1181, %v1409
        %v1411 = vrcp.pop %v1336
        %v1412 = vmul.f32 %v1183, %v1411
        %v1413 = vrcp.pop %v1341
        %v1414 = vmul.f32 %v1185, %v1413
        %v1415 = vrcp.pop %v1346
        %v1416 = vmul.f32 %v1187, %v1415
        %v1417 = vrcp.pop %v1351
        %v1418 = vmul.f32 %v1189, %v1417
        %v1419 = vrcp.pop %v1356
        %v1420 = vmul.f32 %v1191, %v1419
        %v1421 = vrcp.pop %v1361
        %v1422 = vmul.f32 %v1193, %v1421
        %v1423 = vrcp.pop %v1366
        %v1424 = vmul.f32 %v1195, %v1423
        %v1425 = vrcp.pop %v1371
        %v1426 = vmul.f32 %v1197, %v1425
        %v1427 = vrcp.pop %v1376
        %v1428 = vmul.f32 %v1199, %v1427
        %v1429 = vrcp.pop %v1381
        %v1430 = vmul.f32 %v1201, %v1429
        %v1431 = vrcp.pop %v1386
        %v1432 = vmul.f32 %v1203, %v1431
        %v1433 = vrcp.pop %v1391
        %v1434 = vmul.f32 %v1205, %v1433
        %v1435 = vrcp.pop %v1396
        %v1436 = vmul.f32 %v1207, %v1435
        %v1437 = vrcp.pop %v1401
        %v1438 = vmul.f32 %v1209, %v1437
        %v1439 = vrcp.pop %v1406
        %v1440 = vmul.f32 %v1211, %v1439
        %1441 = vst.msk [vmem:[%s355] sm:$0xff] %vm1115, %v1410
        %1442 = vst.msk [vmem:[%s355 + $0x8] sm:$0xff] %vm1115, %v1412
        %1443 = vst.msk [vmem:[%s355 + $0x10] sm:$0xff] %vm1115, %v1414
        %1444 = vst.msk [vmem:[%s355 + $0x18] sm:$0xff] %vm1115, %v1416
        %1445 = vst.msk [vmem:[%s355 + $0x20] sm:$0xff] %vm1115, %v1418
        %1446 = vst.msk [vmem:[%s355 + $0x28] sm:$0xff] %vm1115, %v1420
        %1447 = vst.msk [vmem:[%s355 + $0x30] sm:$0xff] %vm1115, %v1422
        %1448 = vst.msk [vmem:[%s355 + $0x38] sm:$0xff] %vm1115, %v1424
        %1449 = vst.msk [vmem:[%s355 + $0x40] sm:$0xff] %vm1115, %v1426
        %1450 = vst.msk [vmem:[%s355 + $0x48] sm:$0xff] %vm1115, %v1428
        %1451 = vst.msk [vmem:[%s355 + $0x50] sm:$0xff] %vm1115, %v1430
        %1452 = vst.msk [vmem:[%s355 + $0x58] sm:$0xff] %vm1115, %v1432
        %1453 = vst.msk [vmem:[%s355 + $0x60] sm:$0xff] %vm1115, %v1434
        %1454 = vst.msk [vmem:[%s355 + $0x68] sm:$0xff] %vm1115, %v1436
        %1455 = vst.msk [vmem:[%s355 + $0x70] sm:$0xff] %vm1115, %v1438
        %1456 = vst.msk [vmem:[%s355 + $0x78] sm:$0xff] %vm1115, %v1440
        %v1457 = vand.u32 2147483647, %v1053
        %v1458 = vand.u32 2147483647, %v1056
        %v1459 = vand.u32 2147483647, %v1061
        %v1460 = vand.u32 2147483647, %v1064
        %v1461 = vand.u32 2147483647, %v1069
        %v1462 = vand.u32 2147483647, %v1072
        %v1463 = vand.u32 2147483647, %v1077
        %v1464 = vand.u32 2147483647, %v1080
        %v1465 = vand.u32 2147483647, %v1085
        %v1466 = vand.u32 2147483647, %v1088
        %v1467 = vand.u32 2147483647, %v1093
        %v1468 = vand.u32 2147483647, %v1096
        %v1469 = vand.u32 2147483647, %v1101
        %v1470 = vand.u32 2147483647, %v1104
        %v1471 = vand.u32 2147483647, %v1109
        %v1472 = vand.u32 2147483647, %v1112
        %1489 = vrot.lane.b32.xlu0 %v1457, 32
        %v1490 = vpop.permute.xlu0 %1489
        %1491 = vrot.lane.b32.xlu0 %v1458, 32
        %v1492 = vpop.permute.xlu0 %1491
        %1493 = vrot.lane.b32.xlu0 %v1459, 32
        %v1494 = vpop.permute.xlu0 %1493
        %1495 = vrot.lane.b32.xlu0 %v1460, 32
        %v1496 = vpop.permute.xlu0 %1495
        %1497 = vrot.lane.b32.xlu0 %v1461, 32
        %v1498 = vpop.permute.xlu0 %1497
        %1499 = vrot.lane.b32.xlu0 %v1462, 32
        %v1500 = vpop.permute.xlu0 %1499
        %1501 = vrot.lane.b32.xlu0 %v1463, 32
        %v1502 = vpop.permute.xlu0 %1501
        %1503 = vrot.lane.b32.xlu0 %v1464, 32
        %v1504 = vpop.permute.xlu0 %1503
        %1505 = vrot.lane.b32.xlu0 %v1465, 32
        %v1506 = vpop.permute.xlu0 %1505
        %1507 = vrot.lane.b32.xlu0 %v1466, 32
        %v1508 = vpop.permute.xlu0 %1507
        %1509 = vrot.lane.b32.xlu0 %v1467, 32
        %v1510 = vpop.permute.xlu0 %1509
        %1511 = vrot.lane.b32.xlu0 %v1468, 32
        %v1512 = vpop.permute.xlu0 %1511
        %1513 = vrot.lane.b32.xlu0 %v1469, 32
        %v1514 = vpop.permute.xlu0 %1513
        %1515 = vrot.lane.b32.xlu0 %v1470, 32
        %v1516 = vpop.permute.xlu0 %1515
        %1517 = vrot.lane.b32.xlu0 %v1471, 32
        %v1518 = vpop.permute.xlu0 %1517
        %1519 = vrot.lane.b32.xlu0 %v1472, 32
        %v1520 = vpop.permute.xlu0 %1519
        %vm1537 = vcmask 523520
        %1538 = vst.msk [vmem:[%s355] sm:$0xff] %vm1537, %v1490
        %1539 = vst.msk [vmem:[%s355 + $0x8] sm:$0xff] %vm1537, %v1492
        %1540 = vst.msk [vmem:[%s355 + $0x10] sm:$0xff] %vm1537, %v1494
        %1541 = vst.msk [vmem:[%s355 + $0x18] sm:$0xff] %vm1537, %v1496
        %1542 = vst.msk [vmem:[%s355 + $0x20] sm:$0xff] %vm1537, %v1498
        %1543 = vst.msk [vmem:[%s355 + $0x28] sm:$0xff] %vm1537, %v1500
        %1544 = vst.msk [vmem:[%s355 + $0x30] sm:$0xff] %vm1537, %v1502
        %1545 = vst.msk [vmem:[%s355 + $0x38] sm:$0xff] %vm1537, %v1504
        %1546 = vst.msk [vmem:[%s355 + $0x40] sm:$0xff] %vm1537, %v1506
        %1547 = vst.msk [vmem:[%s355 + $0x48] sm:$0xff] %vm1537, %v1508
        %1548 = vst.msk [vmem:[%s355 + $0x50] sm:$0xff] %vm1537, %v1510
        %1549 = vst.msk [vmem:[%s355 + $0x58] sm:$0xff] %vm1537, %v1512
        %1550 = vst.msk [vmem:[%s355 + $0x60] sm:$0xff] %vm1537, %v1514
        %1551 = vst.msk [vmem:[%s355 + $0x68] sm:$0xff] %vm1537, %v1516
        %1552 = vst.msk [vmem:[%s355 + $0x70] sm:$0xff] %vm1537, %v1518
        %1553 = vst.msk [vmem:[%s355 + $0x78] sm:$0xff] %vm1537, %v1520
        %1570 = vrot.lane.b32.xlu0 %v1053, 64
        %v1571 = vpop.permute.xlu0 %1570
        %1572 = vrot.lane.b32.xlu0 %v1056, 64
        %v1573 = vpop.permute.xlu0 %1572
        %1574 = vrot.lane.b32.xlu0 %v1061, 64
        %v1575 = vpop.permute.xlu0 %1574
        %1576 = vrot.lane.b32.xlu0 %v1064, 64
        %v1577 = vpop.permute.xlu0 %1576
        %1578 = vrot.lane.b32.xlu0 %v1069, 64
        %v1579 = vpop.permute.xlu0 %1578
        %1580 = vrot.lane.b32.xlu0 %v1072, 64
        %v1581 = vpop.permute.xlu0 %1580
        %1582 = vrot.lane.b32.xlu0 %v1077, 64
        %v1583 = vpop.permute.xlu0 %1582
        %1584 = vrot.lane.b32.xlu0 %v1080, 64
        %v1585 = vpop.permute.xlu0 %1584
        %1586 = vrot.lane.b32.xlu0 %v1085, 64
        %v1587 = vpop.permute.xlu0 %1586
        %1588 = vrot.lane.b32.xlu0 %v1088, 64
        %v1589 = vpop.permute.xlu0 %1588
        %1590 = vrot.lane.b32.xlu0 %v1093, 64
        %v1591 = vpop.permute.xlu0 %1590
        %1592 = vrot.lane.b32.xlu0 %v1096, 64
        %v1593 = vpop.permute.xlu0 %1592
        %1594 = vrot.lane.b32.xlu0 %v1101, 64
        %v1595 = vpop.permute.xlu0 %1594
        %1596 = vrot.lane.b32.xlu0 %v1104, 64
        %v1597 = vpop.permute.xlu0 %1596
        %1598 = vrot.lane.b32.xlu0 %v1109, 64
        %v1599 = vpop.permute.xlu0 %1598
        %1600 = vrot.lane.b32.xlu0 %v1112, 64
        %v1601 = vpop.permute.xlu0 %1600
        %vm1618 = vcmask 785920
        %1619 = vst.msk [vmem:[%s355] sm:$0xff] %vm1618, %v1571
        %1620 = vst.msk [vmem:[%s355 + $0x8] sm:$0xff] %vm1618, %v1573
        %1621 = vst.msk [vmem:[%s355 + $0x10] sm:$0xff] %vm1618, %v1575
        %1622 = vst.msk [vmem:[%s355 + $0x18] sm:$0xff] %vm1618, %v1577
        %1623 = vst.msk [vmem:[%s355 + $0x20] sm:$0xff] %vm1618, %v1579
        %1624 = vst.msk [vmem:[%s355 + $0x28] sm:$0xff] %vm1618, %v1581
        %1625 = vst.msk [vmem:[%s355 + $0x30] sm:$0xff] %vm1618, %v1583
        %1626 = vst.msk [vmem:[%s355 + $0x38] sm:$0xff] %vm1618, %v1585
        %1627 = vst.msk [vmem:[%s355 + $0x40] sm:$0xff] %vm1618, %v1587
        %1628 = vst.msk [vmem:[%s355 + $0x48] sm:$0xff] %vm1618, %v1589
        %1629 = vst.msk [vmem:[%s355 + $0x50] sm:$0xff] %vm1618, %v1591
        %1630 = vst.msk [vmem:[%s355 + $0x58] sm:$0xff] %vm1618, %v1593
        %1631 = vst.msk [vmem:[%s355 + $0x60] sm:$0xff] %vm1618, %v1595
        %1632 = vst.msk [vmem:[%s355 + $0x68] sm:$0xff] %vm1618, %v1597
        %1633 = vst.msk [vmem:[%s355 + $0x70] sm:$0xff] %vm1618, %v1599
        %1634 = vst.msk [vmem:[%s355 + $0x78] sm:$0xff] %vm1618, %v1601
        %s1635 = smul.u32 16, %s23
        %p1636 = scmp.lt.s32.totalorder %s1635, 31
        %s1637 = scalar_select %p1636, %s1635, 31
        %s1638 = smul.addr %s1637, 8
        %s1639 = scalar_lea.vmem %s8, %s1638
        // Predicated region
        $region65: #{tpu_custom_call.1} parent=51 // pred_check
          %p1640 = pneg %p214
        $region66: #{tpu_custom_call.1} parent=51 // pred_check_branch
          %1642 = sbr.rel (%p1640) target = $region68
        $region67: #{tpu_custom_call.1} parent=51 // pred_region
          %s1643 = smul.u32 16, %s23
        $region68: #{tpu_custom_call.1} parent=51 // pred_fallthru
          _
      $region52: #{tpu_custom_call.1} parent=5 // pred_fallthru
        _
      %p1644 = scmp.le.s32.totalorder 2, %s18
      // Predicated region
      $region69: #{tpu_custom_call.1} parent=5 // pred_check
        %p1645 = pneg %p1644
      $region70: #{tpu_custom_call.1} parent=5 // pred_check_branch
        %1647 = sbr.rel (%p1645) target = $region72
      $region71: #{tpu_custom_call.1} parent=5 // pred_region
        %s1648 = ssub.s32 %s18, 2
        // Predicated region
        $region73: #{tpu_custom_call.1} parent=71 // pred_check
          %p1649 = pneg %p220
        $region74: #{tpu_custom_call.1} parent=71 // pred_check_branch
          %1651 = sbr.rel (%p1649) target = $region76
        $region75: #{tpu_custom_call.1} parent=71 // pred_region
          %s1652 = smul.u32 16, %s24
          %p1653 = scmp.lt.s32.totalorder %s1652, 31
          %s1654 = scalar_select %p1653, %s1652, 31
          %s1655 = smul.addr %s1654, 8
          %s1656 = scalar_lea.vmem %s8, %s1655
        $region76: #{tpu_custom_call.1} parent=71 // pred_fallthru
          _
      $region72: #{tpu_custom_call.1} parent=5 // pred_fallthru
        _
    $region6: #{tpu_custom_call.1} parent=1 // loop_footer
      %s22 = sadd.s32 1, %s18
    $region7: #{tpu_custom_call.1} parent=1 // loop_footer_branch
      %17 = sbr.rel target = $region3
    $region8: #{tpu_custom_call.1} parent=1 // loop_exit
      _
    %1657 = vsyncpa [#allocation3], 1
    %s1658 = scalar_lea.sflag [#allocation3], 1
    %1659 = vsyncpa %s1658, 1
    %1660 = vsyncpa [#allocation5], 1

</llo_original>
